<compile_context>
chip_gen: v7x
topology: tpu7x:2x2x1
jax: 0.10.0
libtpu: 0.0.40
codegen_flags: <defaults>
</compile_context>

<pallas_src>
import functools

import jax
import jax.numpy as jnp
from jax.experimental import pallas as pl
from jax.experimental.pallas import tpu as pltpu


def _round_up(x, m):
    return ((x + m - 1) // m) * m


def _pad_axis_to(x, axis, target):
    pad = target - x.shape[axis]
    if pad <= 0:
        return x
    widths = [(0, 0)] * x.ndim
    widths[axis] = (0, pad)
    return jnp.pad(x, widths)


def _sage_fused_kernel(adj_ref, xsrc_ref, hdst_ref, wneigh_ref, wself_ref,
                       bias_ref, out_ref):
    """One (dst-tile i, src-K-tile k) grid step of fused SAGEConv (mean).

    adj_ref    : (tm, tk)           f32 row-normalized adjacency tile (cast to
                                    bf16 in-kernel, avoiding a wrapper pass)
    xsrc_ref   : (tk, d_in_src)     bf16 source feature tile
    hdst_ref   : (tm, d_in_dst)     bf16 destination (self) feature tile
    wneigh_ref : (d_in_src, d_pad)  bf16 fc_neigh weight (transposed, padded)
    wself_ref  : (d_in_dst, d_pad)  bf16 fc_self  weight (transposed, padded)
    bias_ref   : (1, d_pad)         f32
    out_ref    : (tm, d_pad)        f32, lane-dense; doubles as the f32
                                    accumulator (k-invariant index_map).
    """
    k = pl.program_id(1)

    @pl.when(k == 0)
    def _():
        # Prologue: fc_self + bias initialize the resident output block.
        out_ref[...] = (jnp.dot(hdst_ref[...], wself_ref[...],
                                preferred_element_type=jnp.float32)
                        + bias_ref[...])

    # Fused fc_neigh: project this source K-tile on the fly, then accumulate
    # the aggregation partial  A[:, k-tile] @ (X_src[k-tile] @ W_neigh^T).
    p_tile = jnp.dot(xsrc_ref[...], wneigh_ref[...],
                     preferred_element_type=jnp.float32).astype(jnp.bfloat16)
    out_ref[...] += jnp.dot(adj_ref[...].astype(jnp.bfloat16), p_tile,
                            preferred_element_type=jnp.float32)


@functools.partial(jax.jit, static_argnames=("tm", "tk"))
def sage_conv_hp(adj_norm, feat_src, feat_dst, w_self, w_neigh, bias, *,
                 tm=512, tk=512):
    """SAGEConvHP forward (mean aggregator, nprocs=1 => comm ops are identity).

    adj_norm : (N_dst, N_src) f32 row-normalized adjacency (mean aggregation)
    feat_src : (N_src, D_in_src) f32
    feat_dst : (N_dst, D_in_dst) f32
    w_self   : (D_out, D_in_dst) f32  (PyTorch nn.Linear layout)
    w_neigh  : (D_out, D_in_src) f32
    bias     : (D_out,) f32
    returns  : (N_dst, D_out) f32
    """
    n_dst, n_src = adj_norm.shape
    d_in_src = feat_src.shape[1]
    d_in_dst = feat_dst.shape[1]
    d_out = w_neigh.shape[0]

    # Lane-dense output width (multiple of 128).
    d_pad = _round_up(d_out, 128)

    # Clamp tiles for small problems (keeps (8,128) alignment, avoids gross
    # over-padding).  Defaults give ~1 MiB adjacency tiles so per-grid-step
    # overhead is amortized and DMAs are large.
    # For v7x (2 TensorCores) prefer tm such that n_dst_p // tm stays even.
    tm = min(tm, _round_up(n_dst, 128))
    tk = min(tk, _round_up(n_src, 128))
    n_dst_p = _round_up(n_dst, tm)
    n_src_p = _round_up(n_src, tk)
    n_i = n_dst_p // tm
    n_k = n_src_p // tk

    # Adjacency stays f32 in HBM (cast to bf16 inside the kernel); padding is
    # only for ragged edge tiles (a no-op when shapes already divide tiles).
    adj_p = _pad_axis_to(_pad_axis_to(adj_norm, 0, n_dst_p), 1,
                         n_src_p).astype(jnp.float32)
    # Small operands: cast once to bf16 (they are re-streamed per dst tile).
    xsrc_p = _pad_axis_to(feat_src, 0, n_src_p).astype(jnp.bfloat16)
    hdst_p = _pad_axis_to(feat_dst, 0, n_dst_p).astype(jnp.bfloat16)
    w_neigh_t = _pad_axis_to(w_neigh.T, 1, d_pad).astype(jnp.bfloat16)
    w_self_t = _pad_axis_to(w_self.T, 1, d_pad).astype(jnp.bfloat16)
    bias_2d = _pad_axis_to(bias.reshape(1, d_out), 1, d_pad).astype(jnp.float32)

    # Deeper pipelining on the only operand whose block index changes every k
    # step (the adjacency stream); fall back cleanly if unsupported.
    adj_idx = lambda i, k: (i, k)
    adj_spec = pl.BlockSpec((tm, tk), adj_idx)
    if n_k >= 3:
        try:
            adj_spec = pl.BlockSpec((tm, tk), adj_idx,
                                    pipeline_mode=pl.Buffered(3))
        except (TypeError, AttributeError):
            adj_spec = pl.BlockSpec((tm, tk), adj_idx)

    flops = int(2 * n_dst_p * n_src_p * d_pad               # aggregation
                + 2 * n_i * n_src_p * d_in_src * d_pad      # fused fc_neigh
                + 2 * n_dst_p * d_in_dst * d_pad)           # fc_self
    bytes_accessed = int(n_dst_p * n_src_p * 4               # adj (f32, once)
                         + n_i * n_src_p * d_in_src * 2      # x_src per dst tile
                         + n_dst_p * d_in_dst * 2            # h_dst
                         + (d_in_src + d_in_dst) * d_pad * 2  # weights
                         + d_pad * 4                          # bias
                         + n_dst_p * d_pad * 4)               # output write

    out_p = pl.pallas_call(
        _sage_fused_kernel,
        out_shape=jax.ShapeDtypeStruct((n_dst_p, d_pad), jnp.float32),
        grid_spec=pltpu.PrefetchScalarGridSpec(
            num_scalar_prefetch=0,
            grid=(n_i, n_k),
            in_specs=[
                adj_spec,                                            # adj tile
                pl.BlockSpec((tk, d_in_src), lambda i, k: (k, 0)),   # x_src
                pl.BlockSpec((tm, d_in_dst), lambda i, k: (i, 0)),   # h_dst
                pl.BlockSpec((d_in_src, d_pad), lambda i, k: (0, 0)),  # W_neigh^T
                pl.BlockSpec((d_in_dst, d_pad), lambda i, k: (0, 0)),  # W_self^T
                pl.BlockSpec((1, d_pad), lambda i, k: (0, 0)),       # bias
            ],
            out_specs=pl.BlockSpec((tm, d_pad), lambda i, k: (i, 0)),
        ),
        compiler_params=pltpu.CompilerParams(
            dimension_semantics=("parallel", "arbitrary"),
            vmem_limit_bytes=32 * 1024 * 1024),
        cost_estimate=pl.CostEstimate(
            flops=flops, transcendentals=0, bytes_accessed=bytes_accessed),
    )(adj_p, xsrc_p, hdst_p, w_neigh_t, w_self_t, bias_2d)

    # Slice off the row / lane padding (module returns (N_dst, D_out) f32).
    return out_p[:n_dst, :d_out]


def _xavier_uniform(key, shape, gain):
    """Glorot uniform, matching nn.init.xavier_uniform_ on (fan_out, fan_in)."""
    fan_out, fan_in = shape
    bound = gain * jnp.sqrt(6.0 / (fan_in + fan_out))
    return jax.random.uniform(key, shape, jnp.float32, -bound, bound)


if __name__ == "__main__":
    # Small synthetic problem consistent with SAGEConvHP(in_feats=D_IN,
    # out_feats=D_OUT, aggregator_type='mean', nprocs=1, final_layer=True).
    # Non-multiple N_src / N_dst exercise the ragged-edge padding path.
    N_SRC, N_DST, D_IN, D_OUT = 500, 200, 32, 16

    key = jax.random.PRNGKey(0)
    k_feat, k_adj, k_ws, k_wn = jax.random.split(key, 4)

    # Node features (homogeneous graph: feat_src == feat, feat_dst == prefix).
    feat = jax.random.normal(k_feat, (N_SRC, D_IN), jnp.float32)
    feat_src = feat
    feat_dst = feat[:N_DST]

    # Random graph adjacency with self-loops, then row-normalize (fn.mean).
    adj = (jax.random.uniform(k_adj, (N_DST, N_SRC)) < 0.1).astype(jnp.float32)
    adj = adj.at[jnp.arange(N_DST), jnp.arange(N_DST)].set(1.0)  # self-loops
    deg = jnp.maximum(jnp.sum(adj, axis=1, keepdims=True), 1.0)  # guard deg=0
    adj_norm = adj / deg

    # Parameters: Glorot uniform with gain = calculate_gain('relu'); zero bias.
    gain = jnp.sqrt(2.0)
    w_self = _xavier_uniform(k_ws, (D_OUT, D_IN), gain)    # fc_self.weight
    w_neigh = _xavier_uniform(k_wn, (D_OUT, D_IN), gain)   # fc_neigh.weight
    bias = jnp.zeros((D_OUT,), jnp.float32)

    # TODO(synk): comm_hp_t2d / comm_hp_d2t are multi-process tensor
    # redistributions (torch.distributed); with nprocs=1 they are identity and
    # are elided here.

    out = sage_conv_hp(adj_norm, feat_src, feat_dst, w_self, w_neigh, bias)
    out = jax.block_until_ready(out)
    assert out.shape == (N_DST, D_OUT)

    # Reference mirroring the kernel numerics (bf16 MXU operands, f32
    # accumulation, projection before aggregation).
    adj_b = adj_norm.astype(jnp.bfloat16).astype(jnp.float32)
    xs_b = feat_src.astype(jnp.bfloat16).astype(jnp.float32)
    xd_b = feat_dst.astype(jnp.bfloat16).astype(jnp.float32)
    wn_b = w_neigh.astype(jnp.bfloat16).astype(jnp.float32)
    ws_b = w_self.astype(jnp.bfloat16).astype(jnp.float32)
    psrc_ref = (xs_b @ wn_b.T).astype(jnp.bfloat16).astype(jnp.float32)
    ref_bf16 = adj_b @ psrc_ref + xd_b @ ws_b.T + bias
    assert jnp.allclose(out, ref_bf16, atol=2e-2, rtol=2e-2), \
        float(jnp.max(jnp.abs(out - ref_bf16)))

    # Loose sanity check against the exact f32 original-order reference.
    ref_f32 = (adj_norm @ feat_src) @ w_neigh.T + feat_dst @ w_self.T + bias
    assert jnp.allclose(out, ref_f32, atol=1e-1, rtol=1e-1), \
        float(jnp.max(jnp.abs(out - ref_f32)))

    print("KERNEL_OK")
</pallas_src>

<mosaic_0001>
module attributes {stable_mosaic.version = 11 : i64} {
  func.func @_sage_fused_kernel(%arg0: i32, %arg1: i32, %arg2: memref<256x512xf32, #tpu.memory_space<vmem>>, %arg3: memref<512x32xbf16, #tpu.memory_space<vmem>>, %arg4: memref<256x32xbf16, #tpu.memory_space<vmem>>, %arg5: memref<32x128xbf16, #tpu.memory_space<vmem>>, %arg6: memref<32x128xbf16, #tpu.memory_space<vmem>>, %arg7: memref<1x128xf32, #tpu.memory_space<vmem>>, %arg8: memref<256x128xf32, #tpu.memory_space<vmem>>) attributes {dimension_semantics = [#tpu.dimension_semantics<parallel>, #tpu.dimension_semantics<arbitrary>], iteration_bounds = array<i64: 1, 1>, scalar_prefetch = 0 : i64, scratch_operands = 0 : i64, tpu.core_type = #tpu.core_type<tc>, window_params = [{transform_indices = @transform_0, window_bounds = array<i64: 256, 512>}, {transform_indices = @transform_1, window_bounds = array<i64: 512, 32>}, {transform_indices = @transform_2, window_bounds = array<i64: 256, 32>}, {pipeline_mode = #tpu.pipeline_mode<synchronous>, transform_indices = @transform_3, window_bounds = array<i64: 32, 128>}, {pipeline_mode = #tpu.pipeline_mode<synchronous>, transform_indices = @transform_4, window_bounds = array<i64: 32, 128>}, {pipeline_mode = #tpu.pipeline_mode<synchronous>, transform_indices = @transform_5, window_bounds = array<i64: 1, 128>}, {transform_indices = @transform_6, window_bounds = array<i64: 256, 128>}]} {
    %c0_i32 = arith.constant 0 : i32
    %0 = arith.cmpi eq, %arg1, %c0_i32 : i32
    %1 = arith.extui %0 : i1 to i32
    %c0_i32_0 = arith.constant 0 : i32
    %2 = arith.cmpi ne, %1, %c0_i32_0 : i32
    scf.if %2 {
      %c0_11 = arith.constant 0 : index
      %c0_12 = arith.constant 0 : index
      %13 = vector.load %arg4[%c0_11, %c0_12] : memref<256x32xbf16, #tpu.memory_space<vmem>>, vector<256x32xbf16>
      %c0_13 = arith.constant 0 : index
      %c0_14 = arith.constant 0 : index
      %14 = vector.load %arg6[%c0_13, %c0_14] : memref<32x128xbf16, #tpu.memory_space<vmem>>, vector<32x128xbf16>
      %cst_15 = arith.constant dense<0.000000e+00> : vector<256x128xf32>
      %15 = tpu.matmul %13, %14, %cst_15 {dimension_numbers = #tpu.dot_dimension_numbers<[1], [0], [0], [1], [0, 0, 1, 1], [], []>} : vector<256x32xbf16>, vector<32x128xbf16>, vector<256x128xf32> -> vector<256x128xf32>
      %c0_16 = arith.constant 0 : index
      %c0_17 = arith.constant 0 : index
      %16 = vector.load %arg7[%c0_16, %c0_17] : memref<1x128xf32, #tpu.memory_space<vmem>>, vector<1x128xf32>
      %17 = vector.broadcast %16 : vector<1x128xf32> to vector<256x128xf32>
      %18 = arith.addf %15, %17 : vector<256x128xf32>
      %c0_18 = arith.constant 0 : index
      %c0_19 = arith.constant 0 : index
      %19 = vector.load %arg8[%c0_18, %c0_19] : memref<256x128xf32, #tpu.memory_space<vmem>>, vector<256x128xf32>
      tpu.vector_store %arg8[%c0_18, %c0_19], %18 {strides = array<i32>} : memref<256x128xf32, #tpu.memory_space<vmem>>, vector<256x128xf32>,
    } else {
    }
    %c0 = arith.constant 0 : index
    %c0_1 = arith.constant 0 : index
    %3 = vector.load %arg3[%c0, %c0_1] : memref<512x32xbf16, #tpu.memory_space<vmem>>, vector<512x32xbf16>
    %c0_2 = arith.constant 0 : index
    %c0_3 = arith.constant 0 : index
    %4 = vector.load %arg5[%c0_2, %c0_3] : memref<32x128xbf16, #tpu.memory_space<vmem>>, vector<32x128xbf16>
    %cst = arith.constant dense<0.000000e+00> : vector<512x128xf32>
    %5 = tpu.matmul %3, %4, %cst {dimension_numbers = #tpu.dot_dimension_numbers<[1], [0], [0], [1], [0, 0, 1, 1], [], []>} : vector<512x32xbf16>, vector<32x128xbf16>, vector<512x128xf32> -> vector<512x128xf32>
    %6 = arith.truncf %5 : vector<512x128xf32> to vector<512x128xbf16>
    %c0_4 = arith.constant 0 : index
    %c0_5 = arith.constant 0 : index
    %7 = vector.load %arg8[%c0_4, %c0_5] : memref<256x128xf32, #tpu.memory_space<vmem>>, vector<256x128xf32>
    %c0_6 = arith.constant 0 : index
    %c0_7 = arith.constant 0 : index
    %8 = vector.load %arg2[%c0_6, %c0_7] : memref<256x512xf32, #tpu.memory_space<vmem>>, vector<256x512xf32>
    %9 = arith.truncf %8 : vector<256x512xf32> to vector<256x512xbf16>
    %cst_8 = arith.constant dense<0.000000e+00> : vector<256x128xf32>
    %10 = tpu.matmul %9, %6, %cst_8 {dimension_numbers = #tpu.dot_dimension_numbers<[1], [0], [0], [1], [0, 0, 1, 1], [], []>} : vector<256x512xbf16>, vector<512x128xbf16>, vector<256x128xf32> -> vector<256x128xf32>
    %11 = arith.addf %7, %10 : vector<256x128xf32>
    %c0_9 = arith.constant 0 : index
    %c0_10 = arith.constant 0 : index
    %12 = vector.load %arg8[%c0_9, %c0_10] : memref<256x128xf32, #tpu.memory_space<vmem>>, vector<256x128xf32>
    tpu.vector_store %arg8[%c0_9, %c0_10], %11 {strides = array<i32>} : memref<256x128xf32, #tpu.memory_space<vmem>>, vector<256x128xf32>,
    return
  }
  func.func @transform_0(%arg0: i32, %arg1: i32) -> (i32, i32) {
    %c0_i32 = arith.constant 0 : i32
    return %arg0, %arg1 : i32, i32
  }
  func.func @transform_1(%arg0: i32, %arg1: i32) -> (i32, i32) {
    %c0_i32 = arith.constant 0 : i32
    %c0_i32_0 = arith.constant 0 : i32
    return %arg1, %c0_i32 : i32, i32
  }
  func.func @transform_2(%arg0: i32, %arg1: i32) -> (i32, i32) {
    %c0_i32 = arith.constant 0 : i32
    %c0_i32_0 = arith.constant 0 : i32
    return %arg0, %c0_i32 : i32, i32
  }
  func.func @transform_3(%arg0: i32, %arg1: i32) -> (i32, i32) {
    %c0_i32 = arith.constant 0 : i32
    %c0_i32_0 = arith.constant 0 : i32
    %c0_i32_1 = arith.constant 0 : i32
    return %c0_i32, %c0_i32_0 : i32, i32
  }
  func.func @transform_4(%arg0: i32, %arg1: i32) -> (i32, i32) {
    %c0_i32 = arith.constant 0 : i32
    %c0_i32_0 = arith.constant 0 : i32
    %c0_i32_1 = arith.constant 0 : i32
    return %c0_i32, %c0_i32_0 : i32, i32
  }
  func.func @transform_5(%arg0: i32, %arg1: i32) -> (i32, i32) {
    %c0_i32 = arith.constant 0 : i32
    %c0_i32_0 = arith.constant 0 : i32
    %c0_i32_1 = arith.constant 0 : i32
    return %c0_i32, %c0_i32_0 : i32, i32
  }
  func.func @transform_6(%arg0: i32, %arg1: i32) -> (i32, i32) {
    %c0_i32 = arith.constant 0 : i32
    %c0_i32_0 = arith.constant 0 : i32
    return %arg0, %c0_i32 : i32, i32
  }
}

</mosaic_0001>

<llo_original>
// kernel: sage_conv_hp.1
$region0: #{sage_conv_hp.1}
  #allocation0 [shape = 'u32[]', space=smem, size = 0x4, offset = 0x4, fixed_abs, tag = 'smem constant byte address 0x4 - core index']
  #allocation1 [shape = 'u32[144,128]{1,0:T(1,128)}', space=vmem, size = 0x12000, scoped, tag = 'internal scratch']
  %s0 = inlined_call_operand.vmem [shape: f32[256,512], index: 0, kind: input, shape index: {}]
  %s1 = inlined_call_operand.vmem [shape: bf16[512,32], index: 1, kind: input, shape index: {}]
  %s2 = inlined_call_operand.vmem [shape: bf16[256,32], index: 2, kind: input, shape index: {}]
  %s3 = inlined_call_operand.vmem [shape: bf16[32,128], index: 3, kind: input, shape index: {}]
  %s4 = inlined_call_operand.vmem [shape: bf16[32,128], index: 4, kind: input, shape index: {}]
  %s5 = inlined_call_operand.vmem [shape: f32[1,128], index: 5, kind: input, shape index: {}]
  %s6 = inlined_call_operand.vmem [shape: f32[256,128], index: 6, kind: output, shape index: {}]
  %s7 = sld [smem:[#allocation0]]
  $region38: #{sage_conv_hp.1} parent=0
    _
  %s9 = ssub.s32 1, %s7
  %s10 = scalar_select 0, %s9, %s7
  // Predicated region
  $region2: #{sage_conv_hp.1} parent=0 // pred_check
    _
  $region3: #{sage_conv_hp.1} parent=0 // pred_check_branch
    %12 = sbr.rel (0) target = $region5
  $region4: #{sage_conv_hp.1} parent=0 // pred_region
    _
  $region5: #{sage_conv_hp.1} parent=0 // pred_fallthru
    _
  // Predicated region
  $region6: #{sage_conv_hp.1} parent=0 // pred_check
    _
  $region7: #{sage_conv_hp.1} parent=0 // pred_check_branch
    %14 = sbr.rel (0) target = $region9
  $region8: #{sage_conv_hp.1} parent=0 // pred_region
    _
  $region9: #{sage_conv_hp.1} parent=0 // pred_fallthru
    _
  // Predicated region
  $region10: #{sage_conv_hp.1} parent=0 // pred_check
    _
  $region11: #{sage_conv_hp.1} parent=0 // pred_check_branch
    %16 = sbr.rel (0) target = $region13
  $region12: #{sage_conv_hp.1} parent=0 // pred_region
    _
  $region13: #{sage_conv_hp.1} parent=0 // pred_fallthru
    _
  // Predicated region
  $region14: #{sage_conv_hp.1} parent=0 // pred_check
    _
  $region15: #{sage_conv_hp.1} parent=0 // pred_check_branch
    %18 = sbr.rel (0) target = $region17
  $region16: #{sage_conv_hp.1} parent=0 // pred_region
    _
  $region17: #{sage_conv_hp.1} parent=0 // pred_fallthru
    _
  // Predicated region
  $region18: #{sage_conv_hp.1} parent=0 // pred_check
    _
  $region19: #{sage_conv_hp.1} parent=0 // pred_check_branch
    %20 = sbr.rel (0) target = $region21
  $region20: #{sage_conv_hp.1} parent=0 // pred_region
    _
  $region21: #{sage_conv_hp.1} parent=0 // pred_fallthru
    _
  // Predicated region
  $region22: #{sage_conv_hp.1} parent=0 // pred_check
    _
  $region23: #{sage_conv_hp.1} parent=0 // pred_check_branch
    %22 = sbr.rel (0) target = $region25
  $region24: #{sage_conv_hp.1} parent=0 // pred_region
    _
  $region25: #{sage_conv_hp.1} parent=0 // pred_fallthru
    _
  %p24 = scmp.eq.s32.totalorder 0, 0
  // Predicated region
  $region26: #{sage_conv_hp.1} parent=0 // pred_check
    %p25 = pneg %p24
  $region27: #{sage_conv_hp.1} parent=0 // pred_check_branch
    %27 = sbr.rel (%p25) target = $region29
  $region28: #{sage_conv_hp.1} parent=0 // pred_region
    %v28 = vld [vmem:[%s2] sm:$0xf]
    %v29 = vld [vmem:[%s2 + $0x4] sm:$0xf]
    %v30 = vld [vmem:[%s2 + $0x8] sm:$0xf]
    %v31 = vld [vmem:[%s2 + $0xc] sm:$0xf]
    %v32 = vld [vmem:[%s2 + $0x10] sm:$0xf]
    %v33 = vld [vmem:[%s2 + $0x14] sm:$0xf]
    %v34 = vld [vmem:[%s2 + $0x18] sm:$0xf]
    %v35 = vld [vmem:[%s2 + $0x1c] sm:$0xf]
    %v36 = vld [vmem:[%s2 + $0x20] sm:$0xf]
    %v37 = vld [vmem:[%s2 + $0x24] sm:$0xf]
    %v38 = vld [vmem:[%s2 + $0x28] sm:$0xf]
    %v39 = vld [vmem:[%s2 + $0x2c] sm:$0xf]
    %v40 = vld [vmem:[%s2 + $0x30] sm:$0xf]
    %v41 = vld [vmem:[%s2 + $0x34] sm:$0xf]
    %v42 = vld [vmem:[%s2 + $0x38] sm:$0xf]
    %v43 = vld [vmem:[%s2 + $0x3c] sm:$0xf]
    %v44 = vld [vmem:[%s2 + $0x40] sm:$0xf]
    %v45 = vld [vmem:[%s2 + $0x44] sm:$0xf]
    %v46 = vld [vmem:[%s2 + $0x48] sm:$0xf]
    %v47 = vld [vmem:[%s2 + $0x4c] sm:$0xf]
    %v48 = vld [vmem:[%s2 + $0x50] sm:$0xf]
    %v49 = vld [vmem:[%s2 + $0x54] sm:$0xf]
    %v50 = vld [vmem:[%s2 + $0x58] sm:$0xf]
    %v51 = vld [vmem:[%s2 + $0x5c] sm:$0xf]
    %v52 = vld [vmem:[%s2 + $0x60] sm:$0xf]
    %v53 = vld [vmem:[%s2 + $0x64] sm:$0xf]
    %v54 = vld [vmem:[%s2 + $0x68] sm:$0xf]
    %v55 = vld [vmem:[%s2 + $0x6c] sm:$0xf]
    %v56 = vld [vmem:[%s2 + $0x70] sm:$0xf]
    %v57 = vld [vmem:[%s2 + $0x74] sm:$0xf]
    %v58 = vld [vmem:[%s2 + $0x78] sm:$0xf]
    %v59 = vld [vmem:[%s2 + $0x7c] sm:$0xf]
    %v60 = vld [vmem:[%s4] sm:$0xf]
    %v61 = vld [vmem:[%s4 + $0x4] sm:$0xf]
    %v62 = vld [vmem:[%s4 + $0x8] sm:$0xf]
    %v63 = vld [vmem:[%s4 + $0xc] sm:$0xf]
    %v64 = vld [vmem:[%s5] sm:$0x1]
    %v66 = vlaneseq
    %v67 = vshrl.u32 %v66, 7
    %v68 = vsub.s32 0, %v67
    %v69 = vrot.slane %v64, %v68
    %v103 = vunpack.c.l.b16 %v28
    %v104 = vunpack.c.l.b16 %v29
    %v105 = vunpack.c.l.b16 %v30
    %v106 = vunpack.c.l.b16 %v31
    %v107 = vunpack.c.l.b16 %v32
    %v108 = vunpack.c.l.b16 %v33
    %v109 = vunpack.c.l.b16 %v34
    %v110 = vunpack.c.l.b16 %v35
    %v111 = vunpack.c.l.b16 %v36
    %v112 = vunpack.c.l.b16 %v37
    %v113 = vunpack.c.l.b16 %v38
    %v114 = vunpack.c.l.b16 %v39
    %v115 = vunpack.c.l.b16 %v40
    %v116 = vunpack.c.l.b16 %v41
    %v117 = vunpack.c.l.b16 %v42
    %v118 = vunpack.c.l.b16 %v43
    %v119 = vunpack.c.l.b16 %v44
    %v120 = vunpack.c.l.b16 %v45
    %v121 = vunpack.c.l.b16 %v46
    %v122 = vunpack.c.l.b16 %v47
    %v123 = vunpack.c.l.b16 %v48
    %v124 = vunpack.c.l.b16 %v49
    %v125 = vunpack.c.l.b16 %v50
    %v126 = vunpack.c.l.b16 %v51
    %v127 = vunpack.c.l.b16 %v52
    %v128 = vunpack.c.l.b16 %v53
    %v129 = vunpack.c.l.b16 %v54
    %v130 = vunpack.c.l.b16 %v55
    %v131 = vunpack.c.l.b16 %v56
    %v132 = vunpack.c.l.b16 %v57
    %v133 = vunpack.c.l.b16 %v58
    %v134 = vunpack.c.l.b16 %v59
    %v135 = vpack.c.b16 %v104, %v103
    %v136 = vpack.c.b16 %v106, %v105
    %v137 = vpack.c.b16 %v108, %v107
    %v138 = vpack.c.b16 %v110, %v109
    %v139 = vpack.c.b16 %v112, %v111
    %v140 = vpack.c.b16 %v114, %v113
    %v141 = vpack.c.b16 %v116, %v115
    %v142 = vpack.c.b16 %v118, %v117
    %v143 = vpack.c.b16 %v120, %v119
    %v144 = vpack.c.b16 %v122, %v121
    %v145 = vpack.c.b16 %v124, %v123
    %v146 = vpack.c.b16 %v126, %v125
    %v147 = vpack.c.b16 %v128, %v127
    %v148 = vpack.c.b16 %v130, %v129
    %v149 = vpack.c.b16 %v132, %v131
    %v150 = vpack.c.b16 %v134, %v133
    %v155 = vunpack.c.l.b16 %v60
    %v156 = vunpack.c.l.b16 %v61
    %v157 = vunpack.c.l.b16 %v62
    %v158 = vunpack.c.l.b16 %v63
    %v159 = vpack.c.b16 %v156, %v155
    %v160 = vpack.c.b16 %v158, %v157
    %vm163 = vcmask 261120
    %v165 = vsel %vm163, %v135, 0
    %v168 = vsel %vm163, %v136, 0
    %v171 = vsel %vm163, %v137, 0
    %v174 = vsel %vm163, %v138, 0
    %v177 = vsel %vm163, %v139, 0
    %v180 = vsel %vm163, %v140, 0
    %v183 = vsel %vm163, %v141, 0
    %v186 = vsel %vm163, %v142, 0
    %v189 = vsel %vm163, %v143, 0
    %v192 = vsel %vm163, %v144, 0
    %v195 = vsel %vm163, %v145, 0
    %v198 = vsel %vm163, %v146, 0
    %v201 = vsel %vm163, %v147, 0
    %v204 = vsel %vm163, %v148, 0
    %v207 = vsel %vm163, %v149, 0
    %v210 = vsel %vm163, %v150, 0
    %212 = vmatprep.subr.bf16.mxu0 0
    %213 = vmatpush1.bf16.msra.mxu0 %v159
    %214 = vmatprep.subr.bf16.mxu0 0
    %215 = vmatpush1.bf16.msra.mxu0 %v160
    %216 = vmatprep.subr.bf16.mxu0 0
    %217 = vmatpush1.bf16.msra.mxu0 0
    %218 = vmatprep.subr.bf16.mxu0 0
    %219 = vmatpush1.bf16.msra.mxu0 0
    %220 = vmatprep.subr.bf16.mxu0 0
    %221 = vmatpush1.bf16.msra.mxu0 0
    %222 = vmatprep.subr.bf16.mxu0 0
    %223 = vmatpush1.bf16.msra.mxu0 0
    %224 = vmatprep.subr.bf16.mxu0 0
    %225 = vmatpush1.bf16.msra.mxu0 0
    %226 = vmatprep.subr.bf16.mxu0 0
    %227 = vmatpush1.bf16.msra.mxu0 0
    %228 = vmatprep.subr.bf16.mxu0 0
    %229 = vmatpush1.bf16.msra.mxu0 0
    %230 = vmatprep.subr.bf16.mxu0 0
    %231 = vmatpush1.bf16.msra.mxu0 0
    %232 = vmatprep.subr.bf16.mxu0 0
    %233 = vmatpush1.bf16.msra.mxu0 0
    %234 = vmatprep.subr.bf16.mxu0 0
    %235 = vmatpush1.bf16.msra.mxu0 0
    %236 = vmatprep.subr.bf16.mxu0 0
    %237 = vmatpush1.bf16.msra.mxu0 0
    %238 = vmatprep.subr.bf16.mxu0 0
    %239 = vmatpush1.bf16.msra.mxu0 0
    %240 = vmatprep.subr.bf16.mxu0 0
    %241 = vmatpush1.bf16.msra.mxu0 0
    %242 = vmatprep.subr.bf16.mxu0 0
    %243 = vmatpush1.bf16.msra.mxu0 0
    %244 = vmatprep.mubr.bf16.mxu0 0
    %245 = vmatmul.mubr.bf16.gmra.mrb[0].mxu0 %v165
    %v246 = vpop.f32.mrb[0].mxu0
    %v247 = vadd.f32 %v69, %v246
    %v248 = vpop.f32.mrb[0].mxu0
    %v249 = vpop.f32.mrb[0].mxu0
    %v250 = vadd.f32 %v69, %v249
    %v251 = vpop.f32.mrb[0].mxu0
    %252 = vmatprep.mubr.bf16.mxu0 0
    %253 = vmatmul.mubr.bf16.gmra.mrb[0].mxu0 %v168
    %v254 = vpop.f32.mrb[0].mxu0
    %v255 = vadd.f32 %v69, %v254
    %v256 = vpop.f32.mrb[0].mxu0
    %v257 = vpop.f32.mrb[0].mxu0
    %v258 = vadd.f32 %v69, %v257
    %v259 = vpop.f32.mrb[0].mxu0
    %260 = vmatprep.mubr.bf16.mxu0 0
    %261 = vmatmul.mubr.bf16.gmra.mrb[0].mxu0 %v171
    %v262 = vpop.f32.mrb[0].mxu0
    %v263 = vadd.f32 %v69, %v262
    %v264 = vpop.f32.mrb[0].mxu0
    %v265 = vpop.f32.mrb[0].mxu0
    %v266 = vadd.f32 %v69, %v265
    %v267 = vpop.f32.mrb[0].mxu0
    %268 = vmatprep.mubr.bf16.mxu0 0
    %269 = vmatmul.mubr.bf16.gmra.mrb[0].mxu0 %v174
    %v270 = vpop.f32.mrb[0].mxu0
    %v271 = vadd.f32 %v69, %v270
    %v272 = vpop.f32.mrb[0].mxu0
    %v273 = vpop.f32.mrb[0].mxu0
    %v274 = vadd.f32 %v69, %v273
    %v275 = vpop.f32.mrb[0].mxu0
    %276 = vmatprep.mubr.bf16.mxu0 0
    %277 = vmatmul.mubr.bf16.gmra.mrb[0].mxu0 %v177
    %v278 = vpop.f32.mrb[0].mxu0
    %v279 = vadd.f32 %v69, %v278
    %v280 = vpop.f32.mrb[0].mxu0
    %v281 = vpop.f32.mrb[0].mxu0
    %v282 = vadd.f32 %v69, %v281
    %v283 = vpop.f32.mrb[0].mxu0
    %284 = vmatprep.mubr.bf16.mxu0 0
    %285 = vmatmul.mubr.bf16.gmra.mrb[0].mxu0 %v180
    %v286 = vpop.f32.mrb[0].mxu0
    %v287 = vadd.f32 %v69, %v286
    %v288 = vpop.f32.mrb[0].mxu0
    %v289 = vpop.f32.mrb[0].mxu0
    %v290 = vadd.f32 %v69, %v289
    %v291 = vpop.f32.mrb[0].mxu0
    %292 = vmatprep.mubr.bf16.mxu0 0
    %293 = vmatmul.mubr.bf16.gmra.mrb[0].mxu0 %v183
    %v294 = vpop.f32.mrb[0].mxu0
    %v295 = vadd.f32 %v69, %v294
    %v296 = vpop.f32.mrb[0].mxu0
    %v297 = vpop.f32.mrb[0].mxu0
    %v298 = vadd.f32 %v69, %v297
    %v299 = vpop.f32.mrb[0].mxu0
    %300 = vmatprep.mubr.bf16.mxu0 0
    %301 = vmatmul.mubr.bf16.gmra.mrb[0].mxu0 %v186
    %v302 = vpop.f32.mrb[0].mxu0
    %v303 = vadd.f32 %v69, %v302
    %v304 = vpop.f32.mrb[0].mxu0
    %v305 = vpop.f32.mrb[0].mxu0
    %v306 = vadd.f32 %v69, %v305
    %v307 = vpop.f32.mrb[0].mxu0
    %308 = vmatprep.mubr.bf16.mxu0 0
    %309 = vmatmul.mubr.bf16.gmra.mrb[0].mxu0 %v189
    %v310 = vpop.f32.mrb[0].mxu0
    %v311 = vadd.f32 %v69, %v310
    %v312 = vpop.f32.mrb[0].mxu0
    %v313 = vpop.f32.mrb[0].mxu0
    %v314 = vadd.f32 %v69, %v313
    %v315 = vpop.f32.mrb[0].mxu0
    %316 = vmatprep.mubr.bf16.mxu0 0
    %317 = vmatmul.mubr.bf16.gmra.mrb[0].mxu0 %v192
    %v318 = vpop.f32.mrb[0].mxu0
    %v319 = vadd.f32 %v69, %v318
    %v320 = vpop.f32.mrb[0].mxu0
    %v321 = vpop.f32.mrb[0].mxu0
    %v322 = vadd.f32 %v69, %v321
    %v323 = vpop.f32.mrb[0].mxu0
    %324 = vmatprep.mubr.bf16.mxu0 0
    %325 = vmatmul.mubr.bf16.gmra.mrb[0].mxu0 %v195
    %v326 = vpop.f32.mrb[0].mxu0
    %v327 = vadd.f32 %v69, %v326
    %v328 = vpop.f32.mrb[0].mxu0
    %v329 = vpop.f32.mrb[0].mxu0
    %v330 = vadd.f32 %v69, %v329
    %v331 = vpop.f32.mrb[0].mxu0
    %332 = vmatprep.mubr.bf16.mxu0 0
    %333 = vmatmul.mubr.bf16.gmra.mrb[0].mxu0 %v198
    %v334 = vpop.f32.mrb[0].mxu0
    %v335 = vadd.f32 %v69, %v334
    %v336 = vpop.f32.mrb[0].mxu0
    %v337 = vpop.f32.mrb[0].mxu0
    %v338 = vadd.f32 %v69, %v337
    %v339 = vpop.f32.mrb[0].mxu0
    %340 = vmatprep.mubr.bf16.mxu0 0
    %341 = vmatmul.mubr.bf16.gmra.mrb[0].mxu0 %v201
    %v342 = vpop.f32.mrb[0].mxu0
    %v343 = vadd.f32 %v69, %v342
    %v344 = vpop.f32.mrb[0].mxu0
    %v345 = vpop.f32.mrb[0].mxu0
    %v346 = vadd.f32 %v69, %v345
    %v347 = vpop.f32.mrb[0].mxu0
    %348 = vmatprep.mubr.bf16.mxu0 0
    %349 = vmatmul.mubr.bf16.gmra.mrb[0].mxu0 %v204
    %v350 = vpop.f32.mrb[0].mxu0
    %v351 = vadd.f32 %v69, %v350
    %v352 = vpop.f32.mrb[0].mxu0
    %v353 = vpop.f32.mrb[0].mxu0
    %v354 = vadd.f32 %v69, %v353
    %v355 = vpop.f32.mrb[0].mxu0
    %356 = vmatprep.mubr.bf16.mxu0 0
    %357 = vmatmul.mubr.bf16.gmra.mrb[0].mxu0 %v207
    %v358 = vpop.f32.mrb[0].mxu0
    %v359 = vadd.f32 %v69, %v358
    %v360 = vpop.f32.mrb[0].mxu0
    %v361 = vpop.f32.mrb[0].mxu0
    %v362 = vadd.f32 %v69, %v361
    %v363 = vpop.f32.mrb[0].mxu0
    %364 = vmatprep.mubr.bf16.mxu0 0
    %365 = vmatmul.mubr.bf16.gmra.mrb[0].mxu0 %v210
    %v366 = vpop.f32.mrb[0].mxu0
    %v367 = vadd.f32 %v69, %v366
    %v368 = vpop.f32.mrb[0].mxu0
    %v369 = vpop.f32.mrb[0].mxu0
    %v370 = vadd.f32 %v69, %v369
    %v371 = vpop.f32.mrb[0].mxu0
    %372 = vdwg.mxu0
    %373 = vst [vmem:[%s6] sm:$0xff] %v247
    %374 = vst [vmem:[%s6 + $0x8] sm:$0xff] %v250
    %375 = vst [vmem:[%s6 + $0x10] sm:$0xff] %v255
    %376 = vst [vmem:[%s6 + $0x18] sm:$0xff] %v258
    %377 = vst [vmem:[%s6 + $0x20] sm:$0xff] %v263
    %378 = vst [vmem:[%s6 + $0x28] sm:$0xff] %v266
    %379 = vst [vmem:[%s6 + $0x30] sm:$0xff] %v271
    %380 = vst [vmem:[%s6 + $0x38] sm:$0xff] %v274
    %381 = vst [vmem:[%s6 + $0x40] sm:$0xff] %v279
    %382 = vst [vmem:[%s6 + $0x48] sm:$0xff] %v282
    %383 = vst [vmem:[%s6 + $0x50] sm:$0xff] %v287
    %384 = vst [vmem:[%s6 + $0x58] sm:$0xff] %v290
    %385 = vst [vmem:[%s6 + $0x60] sm:$0xff] %v295
    %386 = vst [vmem:[%s6 + $0x68] sm:$0xff] %v298
    %387 = vst [vmem:[%s6 + $0x70] sm:$0xff] %v303
    %388 = vst [vmem:[%s6 + $0x78] sm:$0xff] %v306
    %389 = vst [vmem:[%s6 + $0x80] sm:$0xff] %v311
    %390 = vst [vmem:[%s6 + $0x88] sm:$0xff] %v314
    %391 = vst [vmem:[%s6 + $0x90] sm:$0xff] %v319
    %392 = vst [vmem:[%s6 + $0x98] sm:$0xff] %v322
    %393 = vst [vmem:[%s6 + $0xa0] sm:$0xff] %v327
    %394 = vst [vmem:[%s6 + $0xa8] sm:$0xff] %v330
    %395 = vst [vmem:[%s6 + $0xb0] sm:$0xff] %v335
    %396 = vst [vmem:[%s6 + $0xb8] sm:$0xff] %v338
    %397 = vst [vmem:[%s6 + $0xc0] sm:$0xff] %v343
    %398 = vst [vmem:[%s6 + $0xc8] sm:$0xff] %v346
    %399 = vst [vmem:[%s6 + $0xd0] sm:$0xff] %v351
    %400 = vst [vmem:[%s6 + $0xd8] sm:$0xff] %v354
    %401 = vst [vmem:[%s6 + $0xe0] sm:$0xff] %v359
    %402 = vst [vmem:[%s6 + $0xe8] sm:$0xff] %v362
    %403 = vst [vmem:[%s6 + $0xf0] sm:$0xff] %v367
    %404 = vst [vmem:[%s6 + $0xf8] sm:$0xff] %v370
  $region29: #{sage_conv_hp.1} parent=0 // pred_fallthru
    _
  %v405 = vld [vmem:[%s1] sm:$0xf]
  %v406 = vld [vmem:[%s1 + $0x4] sm:$0xf]
  %v407 = vld [vmem:[%s1 + $0x8] sm:$0xf]
  %v408 = vld [vmem:[%s1 + $0xc] sm:$0xf]
  %v409 = vld [vmem:[%s1 + $0x10] sm:$0xf]
  %v410 = vld [vmem:[%s1 + $0x14] sm:$0xf]
  %v411 = vld [vmem:[%s1 + $0x18] sm:$0xf]
  %v412 = vld [vmem:[%s1 + $0x1c] sm:$0xf]
  %v413 = vld [vmem:[%s1 + $0x20] sm:$0xf]
  %v414 = vld [vmem:[%s1 + $0x24] sm:$0xf]
  %v415 = vld [vmem:[%s1 + $0x28] sm:$0xf]
  %v416 = vld [vmem:[%s1 + $0x2c] sm:$0xf]
  %v417 = vld [vmem:[%s1 + $0x30] sm:$0xf]
  %v418 = vld [vmem:[%s1 + $0x34] sm:$0xf]
  %v419 = vld [vmem:[%s1 + $0x38] sm:$0xf]
  %v420 = vld [vmem:[%s1 + $0x3c] sm:$0xf]
  %v421 = vld [vmem:[%s1 + $0x40] sm:$0xf]
  %v422 = vld [vmem:[%s1 + $0x44] sm:$0xf]
  %v423 = vld [vmem:[%s1 + $0x48] sm:$0xf]
  %v424 = vld [vmem:[%s1 + $0x4c] sm:$0xf]
  %v425 = vld [vmem:[%s1 + $0x50] sm:$0xf]
  %v426 = vld [vmem:[%s1 + $0x54] sm:$0xf]
  %v427 = vld [vmem:[%s1 + $0x58] sm:$0xf]
  %v428 = vld [vmem:[%s1 + $0x5c] sm:$0xf]
  %v429 = vld [vmem:[%s1 + $0x60] sm:$0xf]
  %v430 = vld [vmem:[%s1 + $0x64] sm:$0xf]
  %v431 = vld [vmem:[%s1 + $0x68] sm:$0xf]
  %v432 = vld [vmem:[%s1 + $0x6c] sm:$0xf]
  %v433 = vld [vmem:[%s1 + $0x70] sm:$0xf]
  %v434 = vld [vmem:[%s1 + $0x74] sm:$0xf]
  %v435 = vld [vmem:[%s1 + $0x78] sm:$0xf]
  %v436 = vld [vmem:[%s1 + $0x7c] sm:$0xf]
  %v437 = vld [vmem:[%s1 + $0x80] sm:$0xf]
  %v438 = vld [vmem:[%s1 + $0x84] sm:$0xf]
  %v439 = vld [vmem:[%s1 + $0x88] sm:$0xf]
  %v440 = vld [vmem:[%s1 + $0x8c] sm:$0xf]
  %v441 = vld [vmem:[%s1 + $0x90] sm:$0xf]
  %v442 = vld [vmem:[%s1 + $0x94] sm:$0xf]
  %v443 = vld [vmem:[%s1 + $0x98] sm:$0xf]
  %v444 = vld [vmem:[%s1 + $0x9c] sm:$0xf]
  %v445 = vld [vmem:[%s1 + $0xa0] sm:$0xf]
  %v446 = vld [vmem:[%s1 + $0xa4] sm:$0xf]
  %v447 = vld [vmem:[%s1 + $0xa8] sm:$0xf]
  %v448 = vld [vmem:[%s1 + $0xac] sm:$0xf]
  %v449 = vld [vmem:[%s1 + $0xb0] sm:$0xf]
  %v450 = vld [vmem:[%s1 + $0xb4] sm:$0xf]
  %v451 = vld [vmem:[%s1 + $0xb8] sm:$0xf]
  %v452 = vld [vmem:[%s1 + $0xbc] sm:$0xf]
  %v453 = vld [vmem:[%s1 + $0xc0] sm:$0xf]
  %v454 = vld [vmem:[%s1 + $0xc4] sm:$0xf]
  %v455 = vld [vmem:[%s1 + $0xc8] sm:$0xf]
  %v456 = vld [vmem:[%s1 + $0xcc] sm:$0xf]
  %v457 = vld [vmem:[%s1 + $0xd0] sm:$0xf]
  %v458 = vld [vmem:[%s1 + $0xd4] sm:$0xf]
  %v459 = vld [vmem:[%s1 + $0xd8] sm:$0xf]
  %v460 = vld [vmem:[%s1 + $0xdc] sm:$0xf]
  %v461 = vld [vmem:[%s1 + $0xe0] sm:$0xf]
  %v462 = vld [vmem:[%s1 + $0xe4] sm:$0xf]
  %v463 = vld [vmem:[%s1 + $0xe8] sm:$0xf]
  %v464 = vld [vmem:[%s1 + $0xec] sm:$0xf]
  %v465 = vld [vmem:[%s1 + $0xf0] sm:$0xf]
  %v466 = vld [vmem:[%s1 + $0xf4] sm:$0xf]
  %v467 = vld [vmem:[%s1 + $0xf8] sm:$0xf]
  %v468 = vld [vmem:[%s1 + $0xfc] sm:$0xf]
  %v469 = vld [vmem:[%s3] sm:$0xf]
  %v470 = vld [vmem:[%s3 + $0x4] sm:$0xf]
  %v471 = vld [vmem:[%s3 + $0x8] sm:$0xf]
  %v472 = vld [vmem:[%s3 + $0xc] sm:$0xf]
  %v537 = vunpack.c.l.b16 %v405
  %v538 = vunpack.c.l.b16 %v406
  %v539 = vunpack.c.l.b16 %v407
  %v540 = vunpack.c.l.b16 %v408
  %v541 = vunpack.c.l.b16 %v409
  %v542 = vunpack.c.l.b16 %v410
  %v543 = vunpack.c.l.b16 %v411
  %v544 = vunpack.c.l.b16 %v412
  %v545 = vunpack.c.l.b16 %v413
  %v546 = vunpack.c.l.b16 %v414
  %v547 = vunpack.c.l.b16 %v415
  %v548 = vunpack.c.l.b16 %v416
  %v549 = vunpack.c.l.b16 %v417
  %v550 = vunpack.c.l.b16 %v418
  %v551 = vunpack.c.l.b16 %v419
  %v552 = vunpack.c.l.b16 %v420
  %v553 = vunpack.c.l.b16 %v421
  %v554 = vunpack.c.l.b16 %v422
  %v555 = vunpack.c.l.b16 %v423
  %v556 = vunpack.c.l.b16 %v424
  %v557 = vunpack.c.l.b16 %v425
  %v558 = vunpack.c.l.b16 %v426
  %v559 = vunpack.c.l.b16 %v427
  %v560 = vunpack.c.l.b16 %v428
  %v561 = vunpack.c.l.b16 %v429
  %v562 = vunpack.c.l.b16 %v430
  %v563 = vunpack.c.l.b16 %v431
  %v564 = vunpack.c.l.b16 %v432
  %v565 = vunpack.c.l.b16 %v433
  %v566 = vunpack.c.l.b16 %v434
  %v567 = vunpack.c.l.b16 %v435
  %v568 = vunpack.c.l.b16 %v436
  %v569 = vunpack.c.l.b16 %v437
  %v570 = vunpack.c.l.b16 %v438
  %v571 = vunpack.c.l.b16 %v439
  %v572 = vunpack.c.l.b16 %v440
  %v573 = vunpack.c.l.b16 %v441
  %v574 = vunpack.c.l.b16 %v442
  %v575 = vunpack.c.l.b16 %v443
  %v576 = vunpack.c.l.b16 %v444
  %v577 = vunpack.c.l.b16 %v445
  %v578 = vunpack.c.l.b16 %v446
  %v579 = vunpack.c.l.b16 %v447
  %v580 = vunpack.c.l.b16 %v448
  %v581 = vunpack.c.l.b16 %v449
  %v582 = vunpack.c.l.b16 %v450
  %v583 = vunpack.c.l.b16 %v451
  %v584 = vunpack.c.l.b16 %v452
  %v585 = vunpack.c.l.b16 %v453
  %v586 = vunpack.c.l.b16 %v454
  %v587 = vunpack.c.l.b16 %v455
  %v588 = vunpack.c.l.b16 %v456
  %v589 = vunpack.c.l.b16 %v457
  %v590 = vunpack.c.l.b16 %v458
  %v591 = vunpack.c.l.b16 %v459
  %v592 = vunpack.c.l.b16 %v460
  %v593 = vunpack.c.l.b16 %v461
  %v594 = vunpack.c.l.b16 %v462
  %v595 = vunpack.c.l.b16 %v463
  %v596 = vunpack.c.l.b16 %v464
  %v597 = vunpack.c.l.b16 %v465
  %v598 = vunpack.c.l.b16 %v466
  %v599 = vunpack.c.l.b16 %v467
  %v600 = vunpack.c.l.b16 %v468
  %v601 = vpack.c.b16 %v538, %v537
  %v602 = vpack.c.b16 %v540, %v539
  %v603 = vpack.c.b16 %v542, %v541
  %v604 = vpack.c.b16 %v544, %v543
  %v605 = vpack.c.b16 %v546, %v545
  %v606 = vpack.c.b16 %v548, %v547
  %v607 = vpack.c.b16 %v550, %v549
  %v608 = vpack.c.b16 %v552, %v551
  %v609 = vpack.c.b16 %v554, %v553
  %v610 = vpack.c.b16 %v556, %v555
  %v611 = vpack.c.b16 %v558, %v557
  %v612 = vpack.c.b16 %v560, %v559
  %v613 = vpack.c.b16 %v562, %v561
  %v614 = vpack.c.b16 %v564, %v563
  %v615 = vpack.c.b16 %v566, %v565
  %v616 = vpack.c.b16 %v568, %v567
  %v617 = vpack.c.b16 %v570, %v569
  %v618 = vpack.c.b16 %v572, %v571
  %v619 = vpack.c.b16 %v574, %v573
  %v620 = vpack.c.b16 %v576, %v575
  %v621 = vpack.c.b16 %v578, %v577
  %v622 = vpack.c.b16 %v580, %v579
  %v623 = vpack.c.b16 %v582, %v581
  %v624 = vpack.c.b16 %v584, %v583
  %v625 = vpack.c.b16 %v586, %v585
  %v626 = vpack.c.b16 %v588, %v587
  %v627 = vpack.c.b16 %v590, %v589
  %v628 = vpack.c.b16 %v592, %v591
  %v629 = vpack.c.b16 %v594, %v593
  %v630 = vpack.c.b16 %v596, %v595
  %v631 = vpack.c.b16 %v598, %v597
  %v632 = vpack.c.b16 %v600, %v599
  %v637 = vunpack.c.l.b16 %v469
  %v638 = vunpack.c.l.b16 %v470
  %v639 = vunpack.c.l.b16 %v471
  %v640 = vunpack.c.l.b16 %v472
  %v641 = vpack.c.b16 %v638, %v637
  %v642 = vpack.c.b16 %v640, %v639
  %vm645 = vcmask 261120
  %v647 = vsel %vm645, %v601, 0
  %v650 = vsel %vm645, %v602, 0
  %v653 = vsel %vm645, %v603, 0
  %v656 = vsel %vm645, %v604, 0
  %v659 = vsel %vm645, %v605, 0
  %v662 = vsel %vm645, %v606, 0
  %v665 = vsel %vm645, %v607, 0
  %v668 = vsel %vm645, %v608, 0
  %v671 = vsel %vm645, %v609, 0
  %v674 = vsel %vm645, %v610, 0
  %v677 = vsel %vm645, %v611, 0
  %v680 = vsel %vm645, %v612, 0
  %v683 = vsel %vm645, %v613, 0
  %v686 = vsel %vm645, %v614, 0
  %v689 = vsel %vm645, %v615, 0
  %v692 = vsel %vm645, %v616, 0
  %v695 = vsel %vm645, %v617, 0
  %v698 = vsel %vm645, %v618, 0
  %v701 = vsel %vm645, %v619, 0
  %v704 = vsel %vm645, %v620, 0
  %v707 = vsel %vm645, %v621, 0
  %v710 = vsel %vm645, %v622, 0
  %v713 = vsel %vm645, %v623, 0
  %v716 = vsel %vm645, %v624, 0
  %v719 = vsel %vm645, %v625, 0
  %v722 = vsel %vm645, %v626, 0
  %v725 = vsel %vm645, %v627, 0
  %v728 = vsel %vm645, %v628, 0
  %v731 = vsel %vm645, %v629, 0
  %v734 = vsel %vm645, %v630, 0
  %v737 = vsel %vm645, %v631, 0
  %v740 = vsel %vm645, %v632, 0
  %742 = vmatprep.subr.bf16.mxu0 0
  %743 = vmatpush1.bf16.msra.mxu0 %v641
  %744 = vmatprep.subr.bf16.mxu0 0
  %745 = vmatpush1.bf16.msra.mxu0 %v642
  %746 = vmatprep.subr.bf16.mxu0 0
  %747 = vmatpush1.bf16.msra.mxu0 0
  %748 = vmatprep.subr.bf16.mxu0 0
  %749 = vmatpush1.bf16.msra.mxu0 0
  %750 = vmatprep.subr.bf16.mxu0 0
  %751 = vmatpush1.bf16.msra.mxu0 0
  %752 = vmatprep.subr.bf16.mxu0 0
  %753 = vmatpush1.bf16.msra.mxu0 0
  %754 = vmatprep.subr.bf16.mxu0 0
  %755 = vmatpush1.bf16.msra.mxu0 0
  %756 = vmatprep.subr.bf16.mxu0 0
  %757 = vmatpush1.bf16.msra.mxu0 0
  %758 = vmatprep.subr.bf16.mxu0 0
  %759 = vmatpush1.bf16.msra.mxu0 0
  %760 = vmatprep.subr.bf16.mxu0 0
  %761 = vmatpush1.bf16.msra.mxu0 0
  %762 = vmatprep.subr.bf16.mxu0 0
  %763 = vmatpush1.bf16.msra.mxu0 0
  %764 = vmatprep.subr.bf16.mxu0 0
  %765 = vmatpush1.bf16.msra.mxu0 0
  %766 = vmatprep.subr.bf16.mxu0 0
  %767 = vmatpush1.bf16.msra.mxu0 0
  %768 = vmatprep.subr.bf16.mxu0 0
  %769 = vmatpush1.bf16.msra.mxu0 0
  %770 = vmatprep.subr.bf16.mxu0 0
  %771 = vmatpush1.bf16.msra.mxu0 0
  %772 = vmatprep.subr.bf16.mxu0 0
  %773 = vmatpush1.bf16.msra.mxu0 0
  %774 = vmatprep.mubr.bf16.mxu0 0
  %775 = vmatmul.mubr.bf16.gmra.mrb[0].mxu0 %v647
  %v776 = vpop.f32.mrb[0].mxu0
  %v777 = vadd.f32 0.0, %v776
  %v778 = vpop.f32.mrb[0].mxu0
  %v779 = vpop.f32.mrb[0].mxu0
  %v780 = vadd.f32 0.0, %v779
  %v781 = vpop.f32.mrb[0].mxu0
  %782 = vmatprep.mubr.bf16.mxu0 0
  %783 = vmatmul.mubr.bf16.gmra.mrb[0].mxu0 %v650
  %v784 = vpop.f32.mrb[0].mxu0
  %v785 = vadd.f32 0.0, %v784
  %v786 = vpop.f32.mrb[0].mxu0
  %v787 = vpop.f32.mrb[0].mxu0
  %v788 = vadd.f32 0.0, %v787
  %v789 = vpop.f32.mrb[0].mxu0
  %790 = vmatprep.mubr.bf16.mxu0 0
  %791 = vmatmul.mubr.bf16.gmra.mrb[0].mxu0 %v653
  %v792 = vpop.f32.mrb[0].mxu0
  %v793 = vadd.f32 0.0, %v792
  %v794 = vpop.f32.mrb[0].mxu0
  %v795 = vpop.f32.mrb[0].mxu0
  %v796 = vadd.f32 0.0, %v795
  %v797 = vpop.f32.mrb[0].mxu0
  %798 = vmatprep.mubr.bf16.mxu0 0
  %799 = vmatmul.mubr.bf16.gmra.mrb[0].mxu0 %v656
  %v800 = vpop.f32.mrb[0].mxu0
  %v801 = vadd.f32 0.0, %v800
  %v802 = vpop.f32.mrb[0].mxu0
  %v803 = vpop.f32.mrb[0].mxu0
  %v804 = vadd.f32 0.0, %v803
  %v805 = vpop.f32.mrb[0].mxu0
  %806 = vmatprep.mubr.bf16.mxu0 0
  %807 = vmatmul.mubr.bf16.gmra.mrb[0].mxu0 %v659
  %v808 = vpop.f32.mrb[0].mxu0
  %v809 = vadd.f32 0.0, %v808
  %v810 = vpop.f32.mrb[0].mxu0
  %v811 = vpop.f32.mrb[0].mxu0
  %v812 = vadd.f32 0.0, %v811
  %v813 = vpop.f32.mrb[0].mxu0
  %814 = vmatprep.mubr.bf16.mxu0 0
  %815 = vmatmul.mubr.bf16.gmra.mrb[0].mxu0 %v662
  %v816 = vpop.f32.mrb[0].mxu0
  %v817 = vadd.f32 0.0, %v816
  %v818 = vpop.f32.mrb[0].mxu0
  %v819 = vpop.f32.mrb[0].mxu0
  %v820 = vadd.f32 0.0, %v819
  %v821 = vpop.f32.mrb[0].mxu0
  %822 = vmatprep.mubr.bf16.mxu0 0
  %823 = vmatmul.mubr.bf16.gmra.mrb[0].mxu0 %v665
  %v824 = vpop.f32.mrb[0].mxu0
  %v825 = vadd.f32 0.0, %v824
  %v826 = vpop.f32.mrb[0].mxu0
  %v827 = vpop.f32.mrb[0].mxu0
  %v828 = vadd.f32 0.0, %v827
  %v829 = vpop.f32.mrb[0].mxu0
  %830 = vmatprep.mubr.bf16.mxu0 0
  %831 = vmatmul.mubr.bf16.gmra.mrb[0].mxu0 %v668
  %v832 = vpop.f32.mrb[0].mxu0
  %v833 = vadd.f32 0.0, %v832
  %v834 = vpop.f32.mrb[0].mxu0
  %v835 = vpop.f32.mrb[0].mxu0
  %v836 = vadd.f32 0.0, %v835
  %v837 = vpop.f32.mrb[0].mxu0
  %838 = vmatprep.mubr.bf16.mxu0 0
  %839 = vmatmul.mubr.bf16.gmra.mrb[0].mxu0 %v671
  %v840 = vpop.f32.mrb[0].mxu0
  %v841 = vadd.f32 0.0, %v840
  %v842 = vpop.f32.mrb[0].mxu0
  %v843 = vpop.f32.mrb[0].mxu0
  %v844 = vadd.f32 0.0, %v843
  %v845 = vpop.f32.mrb[0].mxu0
  %846 = vmatprep.mubr.bf16.mxu0 0
  %847 = vmatmul.mubr.bf16.gmra.mrb[0].mxu0 %v674
  %v848 = vpop.f32.mrb[0].mxu0
  %v849 = vadd.f32 0.0, %v848
  %v850 = vpop.f32.mrb[0].mxu0
  %v851 = vpop.f32.mrb[0].mxu0
  %v852 = vadd.f32 0.0, %v851
  %v853 = vpop.f32.mrb[0].mxu0
  %854 = vmatprep.mubr.bf16.mxu0 0
  %855 = vmatmul.mubr.bf16.gmra.mrb[0].mxu0 %v677
  %v856 = vpop.f32.mrb[0].mxu0
  %v857 = vadd.f32 0.0, %v856
  %v858 = vpop.f32.mrb[0].mxu0
  %v859 = vpop.f32.mrb[0].mxu0
  %v860 = vadd.f32 0.0, %v859
  %v861 = vpop.f32.mrb[0].mxu0
  %862 = vmatprep.mubr.bf16.mxu0 0
  %863 = vmatmul.mubr.bf16.gmra.mrb[0].mxu0 %v680
  %v864 = vpop.f32.mrb[0].mxu0
  %v865 = vadd.f32 0.0, %v864
  %v866 = vpop.f32.mrb[0].mxu0
  %v867 = vpop.f32.mrb[0].mxu0
  %v868 = vadd.f32 0.0, %v867
  %v869 = vpop.f32.mrb[0].mxu0
  %870 = vmatprep.mubr.bf16.mxu0 0
  %871 = vmatmul.mubr.bf16.gmra.mrb[0].mxu0 %v683
  %v872 = vpop.f32.mrb[0].mxu0
  %v873 = vadd.f32 0.0, %v872
  %v874 = vpop.f32.mrb[0].mxu0
  %v875 = vpop.f32.mrb[0].mxu0
  %v876 = vadd.f32 0.0, %v875
  %v877 = vpop.f32.mrb[0].mxu0
  %878 = vmatprep.mubr.bf16.mxu0 0
  %879 = vmatmul.mubr.bf16.gmra.mrb[0].mxu0 %v686
  %v880 = vpop.f32.mrb[0].mxu0
  %v881 = vadd.f32 0.0, %v880
  %v882 = vpop.f32.mrb[0].mxu0
  %v883 = vpop.f32.mrb[0].mxu0
  %v884 = vadd.f32 0.0, %v883
  %v885 = vpop.f32.mrb[0].mxu0
  %886 = vmatprep.mubr.bf16.mxu0 0
  %887 = vmatmul.mubr.bf16.gmra.mrb[0].mxu0 %v689
  %v888 = vpop.f32.mrb[0].mxu0
  %v889 = vadd.f32 0.0, %v888
  %v890 = vpop.f32.mrb[0].mxu0
  %v891 = vpop.f32.mrb[0].mxu0
  %v892 = vadd.f32 0.0, %v891
  %v893 = vpop.f32.mrb[0].mxu0
  %894 = vmatprep.mubr.bf16.mxu0 0
  %895 = vmatmul.mubr.bf16.gmra.mrb[0].mxu0 %v692
  %v896 = vpop.f32.mrb[0].mxu0
  %v897 = vadd.f32 0.0, %v896
  %v898 = vpop.f32.mrb[0].mxu0
  %v899 = vpop.f32.mrb[0].mxu0
  %v900 = vadd.f32 0.0, %v899
  %v901 = vpop.f32.mrb[0].mxu0
  %902 = vmatprep.mubr.bf16.mxu0 0
  %903 = vmatmul.mubr.bf16.gmra.mrb[0].mxu0 %v695
  %v904 = vpop.f32.mrb[0].mxu0
  %v905 = vadd.f32 0.0, %v904
  %v906 = vpop.f32.mrb[0].mxu0
  %v907 = vpop.f32.mrb[0].mxu0
  %v908 = vadd.f32 0.0, %v907
  %v909 = vpop.f32.mrb[0].mxu0
  %910 = vmatprep.mubr.bf16.mxu0 0
  %911 = vmatmul.mubr.bf16.gmra.mrb[0].mxu0 %v698
  %v912 = vpop.f32.mrb[0].mxu0
  %v913 = vadd.f32 0.0, %v912
  %v914 = vpop.f32.mrb[0].mxu0
  %v915 = vpop.f32.mrb[0].mxu0
  %v916 = vadd.f32 0.0, %v915
  %v917 = vpop.f32.mrb[0].mxu0
  %918 = vmatprep.mubr.bf16.mxu0 0
  %919 = vmatmul.mubr.bf16.gmra.mrb[0].mxu0 %v701
  %v920 = vpop.f32.mrb[0].mxu0
  %v921 = vadd.f32 0.0, %v920
  %v922 = vpop.f32.mrb[0].mxu0
  %v923 = vpop.f32.mrb[0].mxu0
  %v924 = vadd.f32 0.0, %v923
  %v925 = vpop.f32.mrb[0].mxu0
  %926 = vmatprep.mubr.bf16.mxu0 0
  %927 = vmatmul.mubr.bf16.gmra.mrb[0].mxu0 %v704
  %v928 = vpop.f32.mrb[0].mxu0
  %v929 = vadd.f32 0.0, %v928
  %v930 = vpop.f32.mrb[0].mxu0
  %v931 = vpop.f32.mrb[0].mxu0
  %v932 = vadd.f32 0.0, %v931
  %v933 = vpop.f32.mrb[0].mxu0
  %934 = vmatprep.mubr.bf16.mxu0 0
  %935 = vmatmul.mubr.bf16.gmra.mrb[0].mxu0 %v707
  %v936 = vpop.f32.mrb[0].mxu0
  %v937 = vadd.f32 0.0, %v936
  %v938 = vpop.f32.mrb[0].mxu0
  %v939 = vpop.f32.mrb[0].mxu0
  %v940 = vadd.f32 0.0, %v939
  %v941 = vpop.f32.mrb[0].mxu0
  %942 = vmatprep.mubr.bf16.mxu0 0
  %943 = vmatmul.mubr.bf16.gmra.mrb[0].mxu0 %v710
  %v944 = vpop.f32.mrb[0].mxu0
  %v945 = vadd.f32 0.0, %v944
  %v946 = vpop.f32.mrb[0].mxu0
  %v947 = vpop.f32.mrb[0].mxu0
  %v948 = vadd.f32 0.0, %v947
  %v949 = vpop.f32.mrb[0].mxu0
  %950 = vmatprep.mubr.bf16.mxu0 0
  %951 = vmatmul.mubr.bf16.gmra.mrb[0].mxu0 %v713
  %v952 = vpop.f32.mrb[0].mxu0
  %v953 = vadd.f32 0.0, %v952
  %v954 = vpop.f32.mrb[0].mxu0
  %v955 = vpop.f32.mrb[0].mxu0
  %v956 = vadd.f32 0.0, %v955
  %v957 = vpop.f32.mrb[0].mxu0
  %958 = vmatprep.mubr.bf16.mxu0 0
  %959 = vmatmul.mubr.bf16.gmra.mrb[0].mxu0 %v716
  %v960 = vpop.f32.mrb[0].mxu0
  %v961 = vadd.f32 0.0, %v960
  %v962 = vpop.f32.mrb[0].mxu0
  %v963 = vpop.f32.mrb[0].mxu0
  %v964 = vadd.f32 0.0, %v963
  %v965 = vpop.f32.mrb[0].mxu0
  %966 = vmatprep.mubr.bf16.mxu0 0
  %967 = vmatmul.mubr.bf16.gmra.mrb[0].mxu0 %v719
  %v968 = vpop.f32.mrb[0].mxu0
  %v969 = vadd.f32 0.0, %v968
  %v970 = vpop.f32.mrb[0].mxu0
  %v971 = vpop.f32.mrb[0].mxu0
  %v972 = vadd.f32 0.0, %v971
  %v973 = vpop.f32.mrb[0].mxu0
  %974 = vmatprep.mubr.bf16.mxu0 0
  %975 = vmatmul.mubr.bf16.gmra.mrb[0].mxu0 %v722
  %v976 = vpop.f32.mrb[0].mxu0
  %v977 = vadd.f32 0.0, %v976
  %v978 = vpop.f32.mrb[0].mxu0
  %v979 = vpop.f32.mrb[0].mxu0
  %v980 = vadd.f32 0.0, %v979
  %v981 = vpop.f32.mrb[0].mxu0
  %982 = vmatprep.mubr.bf16.mxu0 0
  %983 = vmatmul.mubr.bf16.gmra.mrb[0].mxu0 %v725
  %v984 = vpop.f32.mrb[0].mxu0
  %v985 = vadd.f32 0.0, %v984
  %v986 = vpop.f32.mrb[0].mxu0
  %v987 = vpop.f32.mrb[0].mxu0
  %v988 = vadd.f32 0.0, %v987
  %v989 = vpop.f32.mrb[0].mxu0
  %990 = vmatprep.mubr.bf16.mxu0 0
  %991 = vmatmul.mubr.bf16.gmra.mrb[0].mxu0 %v728
  %v992 = vpop.f32.mrb[0].mxu0
  %v993 = vadd.f32 0.0, %v992
  %v994 = vpop.f32.mrb[0].mxu0
  %v995 = vpop.f32.mrb[0].mxu0
  %v996 = vadd.f32 0.0, %v995
  %v997 = vpop.f32.mrb[0].mxu0
  %998 = vmatprep.mubr.bf16.mxu0 0
  %999 = vmatmul.mubr.bf16.gmra.mrb[0].mxu0 %v731
  %v1000 = vpop.f32.mrb[0].mxu0
  %v1001 = vadd.f32 0.0, %v1000
  %v1002 = vpop.f32.mrb[0].mxu0
  %v1003 = vpop.f32.mrb[0].mxu0
  %v1004 = vadd.f32 0.0, %v1003
  %v1005 = vpop.f32.mrb[0].mxu0
  %1006 = vmatprep.mubr.bf16.mxu0 0
  %1007 = vmatmul.mubr.bf16.gmra.mrb[0].mxu0 %v734
  %v1008 = vpop.f32.mrb[0].mxu0
  %v1009 = vadd.f32 0.0, %v1008
  %v1010 = vpop.f32.mrb[0].mxu0
  %v1011 = vpop.f32.mrb[0].mxu0
  %v1012 = vadd.f32 0.0, %v1011
  %v1013 = vpop.f32.mrb[0].mxu0
  %1014 = vmatprep.mubr.bf16.mxu0 0
  %1015 = vmatmul.mubr.bf16.gmra.mrb[0].mxu0 %v737
  %v1016 = vpop.f32.mrb[0].mxu0
  %v1017 = vadd.f32 0.0, %v1016
  %v1018 = vpop.f32.mrb[0].mxu0
  %v1019 = vpop.f32.mrb[0].mxu0
  %v1020 = vadd.f32 0.0, %v1019
  %v1021 = vpop.f32.mrb[0].mxu0
  %1022 = vmatprep.mubr.bf16.mxu0 0
  %1023 = vmatmul.mubr.bf16.gmra.mrb[0].mxu0 %v740
  %v1024 = vpop.f32.mrb[0].mxu0
  %v1025 = vadd.f32 0.0, %v1024
  %v1026 = vpop.f32.mrb[0].mxu0
  %v1027 = vpop.f32.mrb[0].mxu0
  %v1028 = vadd.f32 0.0, %v1027
  %v1029 = vpop.f32.mrb[0].mxu0
  %1030 = vdwg.mxu0
  %v1031 = vpack.c.bf16 %v780, %v777
  %v1032 = vpack.c.bf16 %v788, %v785
  %v1033 = vpack.c.bf16 %v796, %v793
  %v1034 = vpack.c.bf16 %v804, %v801
  %v1035 = vpack.c.bf16 %v812, %v809
  %v1036 = vpack.c.bf16 %v820, %v817
  %v1037 = vpack.c.bf16 %v828, %v825
  %v1038 = vpack.c.bf16 %v836, %v833
  %v1039 = vpack.c.bf16 %v844, %v841
  %v1040 = vpack.c.bf16 %v852, %v849
  %v1041 = vpack.c.bf16 %v860, %v857
  %v1042 = vpack.c.bf16 %v868, %v865
  %v1043 = vpack.c.bf16 %v876, %v873
  %v1044 = vpack.c.bf16 %v884, %v881
  %v1045 = vpack.c.bf16 %v892, %v889
  %v1046 = vpack.c.bf16 %v900, %v897
  %v1047 = vpack.c.bf16 %v908, %v905
  %v1048 = vpack.c.bf16 %v916, %v913
  %v1049 = vpack.c.bf16 %v924, %v921
  %v1050 = vpack.c.bf16 %v932, %v929
  %v1051 = vpack.c.bf16 %v940, %v937
  %v1052 = vpack.c.bf16 %v948, %v945
  %v1053 = vpack.c.bf16 %v956, %v953
  %v1054 = vpack.c.bf16 %v964, %v961
  %v1055 = vpack.c.bf16 %v972, %v969
  %v1056 = vpack.c.bf16 %v980, %v977
  %v1057 = vpack.c.bf16 %v988, %v985
  %v1058 = vpack.c.bf16 %v996, %v993
  %v1059 = vpack.c.bf16 %v1004, %v1001
  %v1060 = vpack.c.bf16 %v1012, %v1009
  %v1061 = vpack.c.bf16 %v1020, %v1017
  %v1062 = vpack.c.bf16 %v1028, %v1025
  %v1063 = vld [vmem:[%s6] sm:$0xff]
  %v1064 = vld [vmem:[%s6 + $0x8] sm:$0xff]
  %v1065 = vld [vmem:[%s6 + $0x10] sm:$0xff]
  %v1066 = vld [vmem:[%s6 + $0x18] sm:$0xff]
  %v1067 = vld [vmem:[%s6 + $0x20] sm:$0xff]
  %v1068 = vld [vmem:[%s6 + $0x28] sm:$0xff]
  %v1069 = vld [vmem:[%s6 + $0x30] sm:$0xff]
  %v1070 = vld [vmem:[%s6 + $0x38] sm:$0xff]
  %v1071 = vld [vmem:[%s6 + $0x40] sm:$0xff]
  %v1072 = vld [vmem:[%s6 + $0x48] sm:$0xff]
  %v1073 = vld [vmem:[%s6 + $0x50] sm:$0xff]
  %v1074 = vld [vmem:[%s6 + $0x58] sm:$0xff]
  %v1075 = vld [vmem:[%s6 + $0x60] sm:$0xff]
  %v1076 = vld [vmem:[%s6 + $0x68] sm:$0xff]
  %v1077 = vld [vmem:[%s6 + $0x70] sm:$0xff]
  %v1078 = vld [vmem:[%s6 + $0x78] sm:$0xff]
  %v1079 = vld [vmem:[%s6 + $0x80] sm:$0xff]
  %v1080 = vld [vmem:[%s6 + $0x88] sm:$0xff]
  %v1081 = vld [vmem:[%s6 + $0x90] sm:$0xff]
  %v1082 = vld [vmem:[%s6 + $0x98] sm:$0xff]
  %v1083 = vld [vmem:[%s6 + $0xa0] sm:$0xff]
  %v1084 = vld [vmem:[%s6 + $0xa8] sm:$0xff]
  %v1085 = vld [vmem:[%s6 + $0xb0] sm:$0xff]
  %v1086 = vld [vmem:[%s6 + $0xb8] sm:$0xff]
  %v1087 = vld [vmem:[%s6 + $0xc0] sm:$0xff]
  %v1088 = vld [vmem:[%s6 + $0xc8] sm:$0xff]
  %v1089 = vld [vmem:[%s6 + $0xd0] sm:$0xff]
  %v1090 = vld [vmem:[%s6 + $0xd8] sm:$0xff]
  %v1091 = vld [vmem:[%s6 + $0xe0] sm:$0xff]
  %v1092 = vld [vmem:[%s6 + $0xe8] sm:$0xff]
  %v1093 = vld [vmem:[%s6 + $0xf0] sm:$0xff]
  %v1094 = vld [vmem:[%s6 + $0xf8] sm:$0xff]
  %v1095 = vld [vmem:[%s0] sm:$0xff]
  %v1096 = vld [vmem:[%s0 + $0x8] sm:$0xff]
  %v1097 = vld [vmem:[%s0 + $0x10] sm:$0xff]
  %v1098 = vld [vmem:[%s0 + $0x18] sm:$0xff]
  %v1099 = vld [vmem:[%s0 + $0x20] sm:$0xff]
  %v1100 = vld [vmem:[%s0 + $0x28] sm:$0xff]
  %v1101 = vld [vmem:[%s0 + $0x30] sm:$0xff]
  %v1102 = vld [vmem:[%s0 + $0x38] sm:$0xff]
  %v1103 = vld [vmem:[%s0 + $0x40] sm:$0xff]
  %v1104 = vld [vmem:[%s0 + $0x48] sm:$0xff]
  %v1105 = vld [vmem:[%s0 + $0x50] sm:$0xff]
  %v1106 = vld [vmem:[%s0 + $0x58] sm:$0xff]
  %v1107 = vld [vmem:[%s0 + $0x60] sm:$0xff]
  %v1108 = vld [vmem:[%s0 + $0x68] sm:$0xff]
  %v1109 = vld [vmem:[%s0 + $0x70] sm:$0xff]
  %v1110 = vld [vmem:[%s0 + $0x78] sm:$0xff]
  %v1111 = vld [vmem:[%s0 + $0x80] sm:$0xff]
  %v1112 = vld [vmem:[%s0 + $0x88] sm:$0xff]
  %v1113 = vld [vmem:[%s0 + $0x90] sm:$0xff]
  %v1114 = vld [vmem:[%s0 + $0x98] sm:$0xff]
  %v1115 = vld [vmem:[%s0 + $0xa0] sm:$0xff]
  %v1116 = vld [vmem:[%s0 + $0xa8] sm:$0xff]
  %v1117 = vld [vmem:[%s0 + $0xb0] sm:$0xff]
  %v1118 = vld [vmem:[%s0 + $0xb8] sm:$0xff]
  %v1119 = vld [vmem:[%s0 + $0xc0] sm:$0xff]
  %v1120 = vld [vmem:[%s0 + $0xc8] sm:$0xff]
  %v1121 = vld [vmem:[%s0 + $0xd0] sm:$0xff]
  %v1122 = vld [vmem:[%s0 + $0xd8] sm:$0xff]
  %v1123 = vld [vmem:[%s0 + $0xe0] sm:$0xff]
  %v1124 = vld [vmem:[%s0 + $0xe8] sm:$0xff]
  %v1125 = vld [vmem:[%s0 + $0xf0] sm:$0xff]
  %v1126 = vld [vmem:[%s0 + $0xf8] sm:$0xff]
  %v1127 = vld [vmem:[%s0 + $0x100] sm:$0xff]
  %v1128 = vld [vmem:[%s0 + $0x108] sm:$0xff]
  %v1129 = vld [vmem:[%s0 + $0x110] sm:$0xff]
  %v1130 = vld [vmem:[%s0 + $0x118] sm:$0xff]
  %v1131 = vld [vmem:[%s0 + $0x120] sm:$0xff]
  %v1132 = vld [vmem:[%s0 + $0x128] sm:$0xff]
  %v1133 = vld [vmem:[%s0 + $0x130] sm:$0xff]
  %v1134 = vld [vmem:[%s0 + $0x138] sm:$0xff]
  %v1135 = vld [vmem:[%s0 + $0x140] sm:$0xff]
  %v1136 = vld [vmem:[%s0 + $0x148] sm:$0xff]
  %v1137 = vld [vmem:[%s0 + $0x150] sm:$0xff]
  %v1138 = vld [vmem:[%s0 + $0x158] sm:$0xff]
  %v1139 = vld [vmem:[%s0 + $0x160] sm:$0xff]
  %v1140 = vld [vmem:[%s0 + $0x168] sm:$0xff]
  %v1141 = vld [vmem:[%s0 + $0x170] sm:$0xff]
  %v1142 = vld [vmem:[%s0 + $0x178] sm:$0xff]
  %v1143 = vld [vmem:[%s0 + $0x180] sm:$0xff]
  %v1144 = vld [vmem:[%s0 + $0x188] sm:$0xff]
  %v1145 = vld [vmem:[%s0 + $0x190] sm:$0xff]
  %v1146 = vld [vmem:[%s0 + $0x198] sm:$0xff]
  %v1147 = vld [vmem:[%s0 + $0x1a0] sm:$0xff]
  %v1148 = vld [vmem:[%s0 + $0x1a8] sm:$0xff]
  %v1149 = vld [vmem:[%s0 + $0x1b0] sm:$0xff]
  %v1150 = vld [vmem:[%s0 + $0x1b8] sm:$0xff]
  %v1151 = vld [vmem:[%s0 + $0x1c0] sm:$0xff]
  %v1152 = vld [vmem:[%s0 + $0x1c8] sm:$0xff]
  %v1153 = vld [vmem:[%s0 + $0x1d0] sm:$0xff]
  %v1154 = vld [vmem:[%s0 + $0x1d8] sm:$0xff]
  %v1155 = vld [vmem:[%s0 + $0x1e0] sm:$0xff]
  %v1156 = vld [vmem:[%s0 + $0x1e8] sm:$0xff]
  %v1157 = vld [vmem:[%s0 + $0x1f0] sm:$0xff]
  %v1158 = vld [vmem:[%s0 + $0x1f8] sm:$0xff]
  %v1159 = vld [vmem:[%s0 + $0x200] sm:$0xff]
  %v1160 = vld [vmem:[%s0 + $0x208] sm:$0xff]
  %v1161 = vld [vmem:[%s0 + $0x210] sm:$0xff]
  %v1162 = vld [vmem:[%s0 + $0x218] sm:$0xff]
  %v1163 = vld [vmem:[%s0 + $0x220] sm:$0xff]
  %v1164 = vld [vmem:[%s0 + $0x228] sm:$0xff]
  %v1165 = vld [vmem:[%s0 + $0x230] sm:$0xff]
  %v1166 = vld [vmem:[%s0 + $0x238] sm:$0xff]
  %v1167 = vld [vmem:[%s0 + $0x240] sm:$0xff]
  %v1168 = vld [vmem:[%s0 + $0x248] sm:$0xff]
  %v1169 = vld [vmem:[%s0 + $0x250] sm:$0xff]
  %v1170 = vld [vmem:[%s0 + $0x258] sm:$0xff]
  %v1171 = vld [vmem:[%s0 + $0x260] sm:$0xff]
  %v1172 = vld [vmem:[%s0 + $0x268] sm:$0xff]
  %v1173 = vld [vmem:[%s0 + $0x270] sm:$0xff]
  %v1174 = vld [vmem:[%s0 + $0x278] sm:$0xff]
  %v1175 = vld [vmem:[%s0 + $0x280] sm:$0xff]
  %v1176 = vld [vmem:[%s0 + $0x288] sm:$0xff]
  %v1177 = vld [vmem:[%s0 + $0x290] sm:$0xff]
  %v1178 = vld [vmem:[%s0 + $0x298] sm:$0xff]
  %v1179 = vld [vmem:[%s0 + $0x2a0] sm:$0xff]
  %v1180 = vld [vmem:[%s0 + $0x2a8] sm:$0xff]
  %v1181 = vld [vmem:[%s0 + $0x2b0] sm:$0xff]
  %v1182 = vld [vmem:[%s0 + $0x2b8] sm:$0xff]
  %v1183 = vld [vmem:[%s0 + $0x2c0] sm:$0xff]
  %v1184 = vld [vmem:[%s0 + $0x2c8] sm:$0xff]
  %v1185 = vld [vmem:[%s0 + $0x2d0] sm:$0xff]
  %v1186 = vld [vmem:[%s0 + $0x2d8] sm:$0xff]
  %v1187 = vld [vmem:[%s0 + $0x2e0] sm:$0xff]
  %v1188 = vld [vmem:[%s0 + $0x2e8] sm:$0xff]
  %v1189 = vld [vmem:[%s0 + $0x2f0] sm:$0xff]
  %v1190 = vld [vmem:[%s0 + $0x2f8] sm:$0xff]
  %v1191 = vld [vmem:[%s0 + $0x300] sm:$0xff]
  %v1192 = vld [vmem:[%s0 + $0x308] sm:$0xff]
  %v1193 = vld [vmem:[%s0 + $0x310] sm:$0xff]
  %v1194 = vld [vmem:[%s0 + $0x318] sm:$0xff]
  %v1195 = vld [vmem:[%s0 + $0x320] sm:$0xff]
  %v1196 = vld [vmem:[%s0 + $0x328] sm:$0xff]
  %v1197 = vld [vmem:[%s0 + $0x330] sm:$0xff]
  %v1198 = vld [vmem:[%s0 + $0x338] sm:$0xff]
  %v1199 = vld [vmem:[%s0 + $0x340] sm:$0xff]
  %v1200 = vld [vmem:[%s0 + $0x348] sm:$0xff]
  %v1201 = vld [vmem:[%s0 + $0x350] sm:$0xff]
  %v1202 = vld [vmem:[%s0 + $0x358] sm:$0xff]
  %v1203 = vld [vmem:[%s0 + $0x360] sm:$0xff]
  %v1204 = vld [vmem:[%s0 + $0x368] sm:$0xff]
  %v1205 = vld [vmem:[%s0 + $0x370] sm:$0xff]
  %v1206 = vld [vmem:[%s0 + $0x378] sm:$0xff]
  %v1207 = vld [vmem:[%s0 + $0x380] sm:$0xff]
  %v1208 = vld [vmem:[%s0 + $0x388] sm:$0xff]
  %v1209 = vld [vmem:[%s0 + $0x390] sm:$0xff]
  %v1210 = vld [vmem:[%s0 + $0x398] sm:$0xff]
  %v1211 = vld [vmem:[%s0 + $0x3a0] sm:$0xff]
  %v1212 = vld [vmem:[%s0 + $0x3a8] sm:$0xff]
  %v1213 = vld [vmem:[%s0 + $0x3b0] sm:$0xff]
  %v1214 = vld [vmem:[%s0 + $0x3b8] sm:$0xff]
  %v1215 = vld [vmem:[%s0 + $0x3c0] sm:$0xff]
  %v1216 = vld [vmem:[%s0 + $0x3c8] sm:$0xff]
  %v1217 = vld [vmem:[%s0 + $0x3d0] sm:$0xff]
  %v1218 = vld [vmem:[%s0 + $0x3d8] sm:$0xff]
  %v1219 = vld [vmem:[%s0 + $0x3e0] sm:$0xff]
  %v1220 = vld [vmem:[%s0 + $0x3e8] sm:$0xff]
  %v1221 = vld [vmem:[%s0 + $0x3f0] sm:$0xff]
  %v1222 = vld [vmem:[%s0 + $0x3f8] sm:$0xff]
  %v1223 = vpack.c.bf16 %v1099, %v1095
  %v1224 = vpack.c.bf16 %v1100, %v1096
  %v1225 = vpack.c.bf16 %v1101, %v1097
  %v1226 = vpack.c.bf16 %v1102, %v1098
  %v1227 = vpack.c.bf16 %v1107, %v1103
  %v1228 = vpack.c.bf16 %v1108, %v1104
  %v1229 = vpack.c.bf16 %v1109, %v1105
  %v1230 = vpack.c.bf16 %v1110, %v1106
  %v1231 = vpack.c.bf16 %v1115, %v1111
  %v1232 = vpack.c.bf16 %v1116, %v1112
  %v1233 = vpack.c.bf16 %v1117, %v1113
  %v1234 = vpack.c.bf16 %v1118, %v1114
  %v1235 = vpack.c.bf16 %v1123, %v1119
  %v1236 = vpack.c.bf16 %v1124, %v1120
  %v1237 = vpack.c.bf16 %v1125, %v1121
  %v1238 = vpack.c.bf16 %v1126, %v1122
  %v1239 = vpack.c.bf16 %v1131, %v1127
  %v1240 = vpack.c.bf16 %v1132, %v1128
  %v1241 = vpack.c.bf16 %v1133, %v1129
  %v1242 = vpack.c.bf16 %v1134, %v1130
  %v1243 = vpack.c.bf16 %v1139, %v1135
  %v1244 = vpack.c.bf16 %v1140, %v1136
  %v1245 = vpack.c.bf16 %v1141, %v1137
  %v1246 = vpack.c.bf16 %v1142, %v1138
  %v1247 = vpack.c.bf16 %v1147, %v1143
  %v1248 = vpack.c.bf16 %v1148, %v1144
  %v1249 = vpack.c.bf16 %v1149, %v1145
  %v1250 = vpack.c.bf16 %v1150, %v1146
  %v1251 = vpack.c.bf16 %v1155, %v1151
  %v1252 = vpack.c.bf16 %v1156, %v1152
  %v1253 = vpack.c.bf16 %v1157, %v1153
  %v1254 = vpack.c.bf16 %v1158, %v1154
  %v1255 = vpack.c.bf16 %v1163, %v1159
  %v1256 = vpack.c.bf16 %v1164, %v1160
  %v1257 = vpack.c.bf16 %v1165, %v1161
  %v1258 = vpack.c.bf16 %v1166, %v1162
  %v1259 = vpack.c.bf16 %v1171, %v1167
  %v1260 = vpack.c.bf16 %v1172, %v1168
  %v1261 = vpack.c.bf16 %v1173, %v1169
  %v1262 = vpack.c.bf16 %v1174, %v1170
  %v1263 = vpack.c.bf16 %v1179, %v1175
  %v1264 = vpack.c.bf16 %v1180, %v1176
  %v1265 = vpack.c.bf16 %v1181, %v1177
  %v1266 = vpack.c.bf16 %v1182, %v1178
  %v1267 = vpack.c.bf16 %v1187, %v1183
  %v1268 = vpack.c.bf16 %v1188, %v1184
  %v1269 = vpack.c.bf16 %v1189, %v1185
  %v1270 = vpack.c.bf16 %v1190, %v1186
  %v1271 = vpack.c.bf16 %v1195, %v1191
  %v1272 = vpack.c.bf16 %v1196, %v1192
  %v1273 = vpack.c.bf16 %v1197, %v1193
  %v1274 = vpack.c.bf16 %v1198, %v1194
  %v1275 = vpack.c.bf16 %v1203, %v1199
  %v1276 = vpack.c.bf16 %v1204, %v1200
  %v1277 = vpack.c.bf16 %v1205, %v1201
  %v1278 = vpack.c.bf16 %v1206, %v1202
  %v1279 = vpack.c.bf16 %v1211, %v1207
  %v1280 = vpack.c.bf16 %v1212, %v1208
  %v1281 = vpack.c.bf16 %v1213, %v1209
  %v1282 = vpack.c.bf16 %v1214, %v1210
  %v1283 = vpack.c.bf16 %v1219, %v1215
  %v1284 = vpack.c.bf16 %v1220, %v1216
  %v1285 = vpack.c.bf16 %v1221, %v1217
  %v1286 = vpack.c.bf16 %v1222, %v1218
  %1287 = vmatprep.subr.bf16.mxu0 0
  %1288 = vmatpush1.bf16.msra.mxu0 %v1031
  %1289 = vmatprep.subr.bf16.mxu0 0
  %1290 = vmatpush1.bf16.msra.mxu0 %v1032
  %1291 = vmatprep.subr.bf16.mxu0 0
  %1292 = vmatpush1.bf16.msra.mxu0 %v1033
  %1293 = vmatprep.subr.bf16.mxu0 0
  %1294 = vmatpush1.bf16.msra.mxu0 %v1034
  %1295 = vmatprep.subr.bf16.mxu0 0
  %1296 = vmatpush1.bf16.msra.mxu0 %v1035
  %1297 = vmatprep.subr.bf16.mxu0 0
  %1298 = vmatpush1.bf16.msra.mxu0 %v1036
  %1299 = vmatprep.subr.bf16.mxu0 0
  %1300 = vmatpush1.bf16.msra.mxu0 %v1037
  %1301 = vmatprep.subr.bf16.mxu0 0
  %1302 = vmatpush1.bf16.msra.mxu0 %v1038
  %1303 = vmatprep.subr.bf16.mxu0 0
  %1304 = vmatpush1.bf16.msra.mxu0 %v1039
  %1305 = vmatprep.subr.bf16.mxu0 0
  %1306 = vmatpush1.bf16.msra.mxu0 %v1040
  %1307 = vmatprep.subr.bf16.mxu0 0
  %1308 = vmatpush1.bf16.msra.mxu0 %v1041
  %1309 = vmatprep.subr.bf16.mxu0 0
  %1310 = vmatpush1.bf16.msra.mxu0 %v1042
  %1311 = vmatprep.subr.bf16.mxu0 0
  %1312 = vmatpush1.bf16.msra.mxu0 %v1043
  %1313 = vmatprep.subr.bf16.mxu0 0
  %1314 = vmatpush1.bf16.msra.mxu0 %v1044
  %1315 = vmatprep.subr.bf16.mxu0 0
  %1316 = vmatpush1.bf16.msra.mxu0 %v1045
  %1317 = vmatprep.subr.bf16.mxu0 0
  %1318 = vmatpush1.bf16.msra.mxu0 %v1046
  %1319 = vmatprep.mubr.bf16.mxu0 %v1224
  %1320 = vmatmul.mubr.bf16.gmra.mrb[0].mxu0 %v1223
  %v1321 = vpop.f32.mrb[0].mxu0
  %v1322 = vadd.f32 0.0, %v1321
  %v1323 = vpop.f32.mrb[0].mxu0
  %v1324 = vpop.f32.mrb[0].mxu0
  %v1325 = vadd.f32 0.0, %v1324
  %v1326 = vpop.f32.mrb[0].mxu0
  %1327 = vmatprep.mubr.bf16.mxu0 %v1228
  %1328 = vmatmul.mubr.bf16.gmra.mrb[0].mxu0 %v1227
  %v1329 = vpop.f32.mrb[0].mxu0
  %v1330 = vadd.f32 0.0, %v1329
  %v1331 = vpop.f32.mrb[0].mxu0
  %v1332 = vpop.f32.mrb[0].mxu0
  %v1333 = vadd.f32 0.0, %v1332
  %v1334 = vpop.f32.mrb[0].mxu0
  %1335 = vmatprep.mubr.bf16.mxu0 %v1232
  %1336 = vmatmul.mubr.bf16.gmra.mrb[0].mxu0 %v1231
  %v1337 = vpop.f32.mrb[0].mxu0
  %v1338 = vadd.f32 0.0, %v1337
  %v1339 = vpop.f32.mrb[0].mxu0
  %v1340 = vpop.f32.mrb[0].mxu0
  %v1341 = vadd.f32 0.0, %v1340
  %v1342 = vpop.f32.mrb[0].mxu0
  %1343 = vmatprep.mubr.bf16.mxu0 %v1236
  %1344 = vmatmul.mubr.bf16.gmra.mrb[0].mxu0 %v1235
  %v1345 = vpop.f32.mrb[0].mxu0
  %v1346 = vadd.f32 0.0, %v1345
  %v1347 = vpop.f32.mrb[0].mxu0
  %v1348 = vpop.f32.mrb[0].mxu0
  %v1349 = vadd.f32 0.0, %v1348
  %v1350 = vpop.f32.mrb[0].mxu0
  %1351 = vmatprep.mubr.bf16.mxu0 %v1240
  %1352 = vmatmul.mubr.bf16.gmra.mrb[0].mxu0 %v1239
  %v1353 = vpop.f32.mrb[0].mxu0
  %v1354 = vadd.f32 0.0, %v1353
  %v1355 = vpop.f32.mrb[0].mxu0
  %v1356 = vpop.f32.mrb[0].mxu0
  %v1357 = vadd.f32 0.0, %v1356
  %v1358 = vpop.f32.mrb[0].mxu0
  %1359 = vmatprep.mubr.bf16.mxu0 %v1244
  %1360 = vmatmul.mubr.bf16.gmra.mrb[0].mxu0 %v1243
  %v1361 = vpop.f32.mrb[0].mxu0
  %v1362 = vadd.f32 0.0, %v1361
  %v1363 = vpop.f32.mrb[0].mxu0
  %v1364 = vpop.f32.mrb[0].mxu0
  %v1365 = vadd.f32 0.0, %v1364
  %v1366 = vpop.f32.mrb[0].mxu0
  %1367 = vmatprep.mubr.bf16.mxu0 %v1248
  %1368 = vmatmul.mubr.bf16.gmra.mrb[0].mxu0 %v1247
  %v1369 = vpop.f32.mrb[0].mxu0
  %v1370 = vadd.f32 0.0, %v1369
  %v1371 = vpop.f32.mrb[0].mxu0
  %v1372 = vpop.f32.mrb[0].mxu0
  %v1373 = vadd.f32 0.0, %v1372
  %v1374 = vpop.f32.mrb[0].mxu0
  %1375 = vmatprep.mubr.bf16.mxu0 %v1252
  %1376 = vmatmul.mubr.bf16.gmra.mrb[0].mxu0 %v1251
  %v1377 = vpop.f32.mrb[0].mxu0
  %v1378 = vadd.f32 0.0, %v1377
  %v1379 = vpop.f32.mrb[0].mxu0
  %v1380 = vpop.f32.mrb[0].mxu0
  %v1381 = vadd.f32 0.0, %v1380
  %v1382 = vpop.f32.mrb[0].mxu0
  %1383 = vmatprep.mubr.bf16.mxu0 %v1256
  %1384 = vmatmul.mubr.bf16.gmra.mrb[0].mxu0 %v1255
  %v1385 = vpop.f32.mrb[0].mxu0
  %v1386 = vadd.f32 0.0, %v1385
  %v1387 = vpop.f32.mrb[0].mxu0
  %v1388 = vpop.f32.mrb[0].mxu0
  %v1389 = vadd.f32 0.0, %v1388
  %v1390 = vpop.f32.mrb[0].mxu0
  %1391 = vmatprep.mubr.bf16.mxu0 %v1260
  %1392 = vmatmul.mubr.bf16.gmra.mrb[0].mxu0 %v1259
  %v1393 = vpop.f32.mrb[0].mxu0
  %v1394 = vadd.f32 0.0, %v1393
  %v1395 = vpop.f32.mrb[0].mxu0
  %v1396 = vpop.f32.mrb[0].mxu0
  %v1397 = vadd.f32 0.0, %v1396
  %v1398 = vpop.f32.mrb[0].mxu0
  %1399 = vmatprep.mubr.bf16.mxu0 %v1264
  %1400 = vmatmul.mubr.bf16.gmra.mrb[0].mxu0 %v1263
  %v1401 = vpop.f32.mrb[0].mxu0
  %v1402 = vadd.f32 0.0, %v1401
  %v1403 = vpop.f32.mrb[0].mxu0
  %v1404 = vpop.f32.mrb[0].mxu0
  %v1405 = vadd.f32 0.0, %v1404
  %v1406 = vpop.f32.mrb[0].mxu0
  %1407 = vmatprep.mubr.bf16.mxu0 %v1268
  %1408 = vmatmul.mubr.bf16.gmra.mrb[0].mxu0 %v1267
  %v1409 = vpop.f32.mrb[0].mxu0
  %v1410 = vadd.f32 0.0, %v1409
  %v1411 = vpop.f32.mrb[0].mxu0
  %v1412 = vpop.f32.mrb[0].mxu0
  %v1413 = vadd.f32 0.0, %v1412
  %v1414 = vpop.f32.mrb[0].mxu0
  %1415 = vmatprep.mubr.bf16.mxu0 %v1272
  %1416 = vmatmul.mubr.bf16.gmra.mrb[0].mxu0 %v1271
  %v1417 = vpop.f32.mrb[0].mxu0
  %v1418 = vadd.f32 0.0, %v1417
  %v1419 = vpop.f32.mrb[0].mxu0
  %v1420 = vpop.f32.mrb[0].mxu0
  %v1421 = vadd.f32 0.0, %v1420
  %v1422 = vpop.f32.mrb[0].mxu0
  %1423 = vmatprep.mubr.bf16.mxu0 %v1276
  %1424 = vmatmul.mubr.bf16.gmra.mrb[0].mxu0 %v1275
  %v1425 = vpop.f32.mrb[0].mxu0
  %v1426 = vadd.f32 0.0, %v1425
  %v1427 = vpop.f32.mrb[0].mxu0
  %v1428 = vpop.f32.mrb[0].mxu0
  %v1429 = vadd.f32 0.0, %v1428
  %v1430 = vpop.f32.mrb[0].mxu0
  %1431 = vmatprep.mubr.bf16.mxu0 %v1280
  %1432 = vmatmul.mubr.bf16.gmra.mrb[0].mxu0 %v1279
  %v1433 = vpop.f32.mrb[0].mxu0
  %v1434 = vadd.f32 0.0, %v1433
  %v1435 = vpop.f32.mrb[0].mxu0
  %v1436 = vpop.f32.mrb[0].mxu0
  %v1437 = vadd.f32 0.0, %v1436
  %v1438 = vpop.f32.mrb[0].mxu0
  %1439 = vmatprep.mubr.bf16.mxu0 %v1284
  %1440 = vmatmul.mubr.bf16.gmra.mrb[0].mxu0 %v1283
  %v1441 = vpop.f32.mrb[0].mxu0
  %v1442 = vadd.f32 0.0, %v1441
  %v1443 = vpop.f32.mrb[0].mxu0
  %v1444 = vpop.f32.mrb[0].mxu0
  %v1445 = vadd.f32 0.0, %v1444
  %v1446 = vpop.f32.mrb[0].mxu0
  %1447 = vdwg.mxu0
  %1448 = vmatprep.subr.bf16.mxu0 0
  %1449 = vmatpush1.bf16.msra.mxu0 %v1047
  %1450 = vmatprep.subr.bf16.mxu0 0
  %1451 = vmatpush1.bf16.msra.mxu0 %v1048
  %1452 = vmatprep.subr.bf16.mxu0 0
  %1453 = vmatpush1.bf16.msra.mxu0 %v1049
  %1454 = vmatprep.subr.bf16.mxu0 0
  %1455 = vmatpush1.bf16.msra.mxu0 %v1050
  %1456 = vmatprep.subr.bf16.mxu0 0
  %1457 = vmatpush1.bf16.msra.mxu0 %v1051
  %1458 = vmatprep.subr.bf16.mxu0 0
  %1459 = vmatpush1.bf16.msra.mxu0 %v1052
  %1460 = vmatprep.subr.bf16.mxu0 0
  %1461 = vmatpush1.bf16.msra.mxu0 %v1053
  %1462 = vmatprep.subr.bf16.mxu0 0
  %1463 = vmatpush1.bf16.msra.mxu0 %v1054
  %1464 = vmatprep.subr.bf16.mxu0 0
  %1465 = vmatpush1.bf16.msra.mxu0 %v1055
  %1466 = vmatprep.subr.bf16.mxu0 0
  %1467 = vmatpush1.bf16.msra.mxu0 %v1056
  %1468 = vmatprep.subr.bf16.mxu0 0
  %1469 = vmatpush1.bf16.msra.mxu0 %v1057
  %1470 = vmatprep.subr.bf16.mxu0 0
  %1471 = vmatpush1.bf16.msra.mxu0 %v1058
  %1472 = vmatprep.subr.bf16.mxu0 0
  %1473 = vmatpush1.bf16.msra.mxu0 %v1059
  %1474 = vmatprep.subr.bf16.mxu0 0
  %1475 = vmatpush1.bf16.msra.mxu0 %v1060
  %1476 = vmatprep.subr.bf16.mxu0 0
  %1477 = vmatpush1.bf16.msra.mxu0 %v1061
  %1478 = vmatprep.subr.bf16.mxu0 0
  %1479 = vmatpush1.bf16.msra.mxu0 %v1062
  %1480 = vmatprep.mubr.bf16.mxu0 %v1226
  %1481 = vmatmul.mubr.bf16.gmra.mrb[0].mxu0 %v1225
  %v1482 = vpop.f32.mrb[0].mxu0
  %v1483 = vadd.f32 %v1322, %v1482
  %v1484 = vpop.f32.mrb[0].mxu0
  %v1485 = vpop.f32.mrb[0].mxu0
  %v1486 = vadd.f32 %v1325, %v1485
  %v1487 = vpop.f32.mrb[0].mxu0
  %1488 = vmatprep.mubr.bf16.mxu0 %v1230
  %1489 = vmatmul.mubr.bf16.gmra.mrb[0].mxu0 %v1229
  %v1490 = vpop.f32.mrb[0].mxu0
  %v1491 = vadd.f32 %v1330, %v1490
  %v1492 = vpop.f32.mrb[0].mxu0
  %v1493 = vpop.f32.mrb[0].mxu0
  %v1494 = vadd.f32 %v1333, %v1493
  %v1495 = vpop.f32.mrb[0].mxu0
  %1496 = vmatprep.mubr.bf16.mxu0 %v1234
  %1497 = vmatmul.mubr.bf16.gmra.mrb[0].mxu0 %v1233
  %v1498 = vpop.f32.mrb[0].mxu0
  %v1499 = vadd.f32 %v1338, %v1498
  %v1500 = vpop.f32.mrb[0].mxu0
  %v1501 = vpop.f32.mrb[0].mxu0
  %v1502 = vadd.f32 %v1341, %v1501
  %v1503 = vpop.f32.mrb[0].mxu0
  %1504 = vmatprep.mubr.bf16.mxu0 %v1238
  %1505 = vmatmul.mubr.bf16.gmra.mrb[0].mxu0 %v1237
  %v1506 = vpop.f32.mrb[0].mxu0
  %v1507 = vadd.f32 %v1346, %v1506
  %v1508 = vpop.f32.mrb[0].mxu0
  %v1509 = vpop.f32.mrb[0].mxu0
  %v1510 = vadd.f32 %v1349, %v1509
  %v1511 = vpop.f32.mrb[0].mxu0
  %1512 = vmatprep.mubr.bf16.mxu0 %v1242
  %1513 = vmatmul.mubr.bf16.gmra.mrb[0].mxu0 %v1241
  %v1514 = vpop.f32.mrb[0].mxu0
  %v1515 = vadd.f32 %v1354, %v1514
  %v1516 = vpop.f32.mrb[0].mxu0
  %v1517 = vpop.f32.mrb[0].mxu0
  %v1518 = vadd.f32 %v1357, %v1517
  %v1519 = vpop.f32.mrb[0].mxu0
  %1520 = vmatprep.mubr.bf16.mxu0 %v1246
  %1521 = vmatmul.mubr.bf16.gmra.mrb[0].mxu0 %v1245
  %v1522 = vpop.f32.mrb[0].mxu0
  %v1523 = vadd.f32 %v1362, %v1522
  %v1524 = vpop.f32.mrb[0].mxu0
  %v1525 = vpop.f32.mrb[0].mxu0
  %v1526 = vadd.f32 %v1365, %v1525
  %v1527 = vpop.f32.mrb[0].mxu0
  %1528 = vmatprep.mubr.bf16.mxu0 %v1250
  %1529 = vmatmul.mubr.bf16.gmra.mrb[0].mxu0 %v1249
  %v1530 = vpop.f32.mrb[0].mxu0
  %v1531 = vadd.f32 %v1370, %v1530
  %v1532 = vpop.f32.mrb[0].mxu0
  %v1533 = vpop.f32.mrb[0].mxu0
  %v1534 = vadd.f32 %v1373, %v1533
  %v1535 = vpop.f32.mrb[0].mxu0
  %1536 = vmatprep.mubr.bf16.mxu0 %v1254
  %1537 = vmatmul.mubr.bf16.gmra.mrb[0].mxu0 %v1253
  %v1538 = vpop.f32.mrb[0].mxu0
  %v1539 = vadd.f32 %v1378, %v1538
  %v1540 = vpop.f32.mrb[0].mxu0
  %v1541 = vpop.f32.mrb[0].mxu0
  %v1542 = vadd.f32 %v1381, %v1541
  %v1543 = vpop.f32.mrb[0].mxu0
  %1544 = vmatprep.mubr.bf16.mxu0 %v1258
  %1545 = vmatmul.mubr.bf16.gmra.mrb[0].mxu0 %v1257
  %v1546 = vpop.f32.mrb[0].mxu0
  %v1547 = vadd.f32 %v1386, %v1546
  %v1548 = vpop.f32.mrb[0].mxu0
  %v1549 = vpop.f32.mrb[0].mxu0
  %v1550 = vadd.f32 %v1389, %v1549
  %v1551 = vpop.f32.mrb[0].mxu0
  %1552 = vmatprep.mubr.bf16.mxu0 %v1262
  %1553 = vmatmul.mubr.bf16.gmra.mrb[0].mxu0 %v1261
  %v1554 = vpop.f32.mrb[0].mxu0
  %v1555 = vadd.f32 %v1394, %v1554
  %v1556 = vpop.f32.mrb[0].mxu0
  %v1557 = vpop.f32.mrb[0].mxu0
  %v1558 = vadd.f32 %v1397, %v1557
  %v1559 = vpop.f32.mrb[0].mxu0
  %1560 = vmatprep.mubr.bf16.mxu0 %v1266
  %1561 = vmatmul.mubr.bf16.gmra.mrb[0].mxu0 %v1265
  %v1562 = vpop.f32.mrb[0].mxu0
  %v1563 = vadd.f32 %v1402, %v1562
  %v1564 = vpop.f32.mrb[0].mxu0
  %v1565 = vpop.f32.mrb[0].mxu0
  %v1566 = vadd.f32 %v1405, %v1565
  %v1567 = vpop.f32.mrb[0].mxu0
  %1568 = vmatprep.mubr.bf16.mxu0 %v1270
  %1569 = vmatmul.mubr.bf16.gmra.mrb[0].mxu0 %v1269
  %v1570 = vpop.f32.mrb[0].mxu0
  %v1571 = vadd.f32 %v1410, %v1570
  %v1572 = vpop.f32.mrb[0].mxu0
  %v1573 = vpop.f32.mrb[0].mxu0
  %v1574 = vadd.f32 %v1413, %v1573
  %v1575 = vpop.f32.mrb[0].mxu0
  %1576 = vmatprep.mubr.bf16.mxu0 %v1274
  %1577 = vmatmul.mubr.bf16.gmra.mrb[0].mxu0 %v1273
  %v1578 = vpop.f32.mrb[0].mxu0
  %v1579 = vadd.f32 %v1418, %v1578
  %v1580 = vpop.f32.mrb[0].mxu0
  %v1581 = vpop.f32.mrb[0].mxu0
  %v1582 = vadd.f32 %v1421, %v1581
  %v1583 = vpop.f32.mrb[0].mxu0
  %1584 = vmatprep.mubr.bf16.mxu0 %v1278
  %1585 = vmatmul.mubr.bf16.gmra.mrb[0].mxu0 %v1277
  %v1586 = vpop.f32.mrb[0].mxu0
  %v1587 = vadd.f32 %v1426, %v1586
  %v1588 = vpop.f32.mrb[0].mxu0
  %v1589 = vpop.f32.mrb[0].mxu0
  %v1590 = vadd.f32 %v1429, %v1589
  %v1591 = vpop.f32.mrb[0].mxu0
  %1592 = vmatprep.mubr.bf16.mxu0 %v1282
  %1593 = vmatmul.mubr.bf16.gmra.mrb[0].mxu0 %v1281
  %v1594 = vpop.f32.mrb[0].mxu0
  %v1595 = vadd.f32 %v1434, %v1594
  %v1596 = vpop.f32.mrb[0].mxu0
  %v1597 = vpop.f32.mrb[0].mxu0
  %v1598 = vadd.f32 %v1437, %v1597
  %v1599 = vpop.f32.mrb[0].mxu0
  %1600 = vmatprep.mubr.bf16.mxu0 %v1286
  %1601 = vmatmul.mubr.bf16.gmra.mrb[0].mxu0 %v1285
  %v1602 = vpop.f32.mrb[0].mxu0
  %v1603 = vadd.f32 %v1442, %v1602
  %v1604 = vpop.f32.mrb[0].mxu0
  %v1605 = vpop.f32.mrb[0].mxu0
  %v1606 = vadd.f32 %v1445, %v1605
  %v1607 = vpop.f32.mrb[0].mxu0
  %1608 = vdwg.mxu0
  %v1609 = vadd.f32 %v1063, %v1483
  %v1610 = vadd.f32 %v1064, %v1486
  %v1611 = vadd.f32 %v1065, %v1491
  %v1612 = vadd.f32 %v1066, %v1494
  %v1613 = vadd.f32 %v1067, %v1499
  %v1614 = vadd.f32 %v1068, %v1502
  %v1615 = vadd.f32 %v1069, %v1507
  %v1616 = vadd.f32 %v1070, %v1510
  %v1617 = vadd.f32 %v1071, %v1515
  %v1618 = vadd.f32 %v1072, %v1518
  %v1619 = vadd.f32 %v1073, %v1523
  %v1620 = vadd.f32 %v1074, %v1526
  %v1621 = vadd.f32 %v1075, %v1531
  %v1622 = vadd.f32 %v1076, %v1534
  %v1623 = vadd.f32 %v1077, %v1539
  %v1624 = vadd.f32 %v1078, %v1542
  %v1625 = vadd.f32 %v1079, %v1547
  %v1626 = vadd.f32 %v1080, %v1550
  %v1627 = vadd.f32 %v1081, %v1555
  %v1628 = vadd.f32 %v1082, %v1558
  %v1629 = vadd.f32 %v1083, %v1563
  %v1630 = vadd.f32 %v1084, %v1566
  %v1631 = vadd.f32 %v1085, %v1571
  %v1632 = vadd.f32 %v1086, %v1574
  %v1633 = vadd.f32 %v1087, %v1579
  %v1634 = vadd.f32 %v1088, %v1582
  %v1635 = vadd.f32 %v1089, %v1587
  %v1636 = vadd.f32 %v1090, %v1590
  %v1637 = vadd.f32 %v1091, %v1595
  %v1638 = vadd.f32 %v1092, %v1598
  %v1639 = vadd.f32 %v1093, %v1603
  %v1640 = vadd.f32 %v1094, %v1606
  %1641 = vst [vmem:[%s6] sm:$0xff] %v1609
  %1642 = vst [vmem:[%s6 + $0x8] sm:$0xff] %v1610
  %1643 = vst [vmem:[%s6 + $0x10] sm:$0xff] %v1611
  %1644 = vst [vmem:[%s6 + $0x18] sm:$0xff] %v1612
  %1645 = vst [vmem:[%s6 + $0x20] sm:$0xff] %v1613
  %1646 = vst [vmem:[%s6 + $0x28] sm:$0xff] %v1614
  %1647 = vst [vmem:[%s6 + $0x30] sm:$0xff] %v1615
  %1648 = vst [vmem:[%s6 + $0x38] sm:$0xff] %v1616
  %1649 = vst [vmem:[%s6 + $0x40] sm:$0xff] %v1617
  %1650 = vst [vmem:[%s6 + $0x48] sm:$0xff] %v1618
  %1651 = vst [vmem:[%s6 + $0x50] sm:$0xff] %v1619
  %1652 = vst [vmem:[%s6 + $0x58] sm:$0xff] %v1620
  %1653 = vst [vmem:[%s6 + $0x60] sm:$0xff] %v1621
  %1654 = vst [vmem:[%s6 + $0x68] sm:$0xff] %v1622
  %1655 = vst [vmem:[%s6 + $0x70] sm:$0xff] %v1623
  %1656 = vst [vmem:[%s6 + $0x78] sm:$0xff] %v1624
  %1657 = vst [vmem:[%s6 + $0x80] sm:$0xff] %v1625
  %1658 = vst [vmem:[%s6 + $0x88] sm:$0xff] %v1626
  %1659 = vst [vmem:[%s6 + $0x90] sm:$0xff] %v1627
  %1660 = vst [vmem:[%s6 + $0x98] sm:$0xff] %v1628
  %1661 = vst [vmem:[%s6 + $0xa0] sm:$0xff] %v1629
  %1662 = vst [vmem:[%s6 + $0xa8] sm:$0xff] %v1630
  %1663 = vst [vmem:[%s6 + $0xb0] sm:$0xff] %v1631
  %1664 = vst [vmem:[%s6 + $0xb8] sm:$0xff] %v1632
  %1665 = vst [vmem:[%s6 + $0xc0] sm:$0xff] %v1633
  %1666 = vst [vmem:[%s6 + $0xc8] sm:$0xff] %v1634
  %1667 = vst [vmem:[%s6 + $0xd0] sm:$0xff] %v1635
  %1668 = vst [vmem:[%s6 + $0xd8] sm:$0xff] %v1636
  %1669 = vst [vmem:[%s6 + $0xe0] sm:$0xff] %v1637
  %1670 = vst [vmem:[%s6 + $0xe8] sm:$0xff] %v1638
  %1671 = vst [vmem:[%s6 + $0xf0] sm:$0xff] %v1639
  %1672 = vst [vmem:[%s6 + $0xf8] sm:$0xff] %v1640
  // Predicated region
  $region30: #{sage_conv_hp.1} parent=0 // pred_check
    _
  $region31: #{sage_conv_hp.1} parent=0 // pred_check_branch
    %1674 = sbr.rel (0) target = $region33
  $region32: #{sage_conv_hp.1} parent=0 // pred_region
    _
  $region33: #{sage_conv_hp.1} parent=0 // pred_fallthru
    _
  // Predicated region
  $region34: #{sage_conv_hp.1} parent=0 // pred_check
    _
  $region35: #{sage_conv_hp.1} parent=0 // pred_check_branch
    %1676 = sbr.rel (0) target = $region37
  $region36: #{sage_conv_hp.1} parent=0 // pred_region
    _
  $region37: #{sage_conv_hp.1} parent=0 // pred_fallthru
    _

</llo_original>
